<compile_context>
chip_gen: v7x
topology: tpu7x:2x2x1
jax: 0.10.0
libtpu: 0.0.40
codegen_flags: <defaults>
</compile_context>

<pallas_src>
import jax
import jax.numpy as jnp
from jax.experimental import pallas as pl
from jax.experimental.pallas import tpu as pltpu


def _round_up(x, m):
    return ((x + m - 1) // m) * m


def _edge_decoder_kernel(xa_ref, xb_ref,
                         w1a_ref, w1b_ref, b1_ref,
                         w2_ref, b2_ref,
                         w3_ref, b3_ref,
                         w4_ref, b4_ref,
                         w5_ref, b5_ref,
                         o_ref):
    f32 = jnp.float32
    bf16 = jnp.bfloat16

    xa = xa_ref[...].astype(bf16)      # no-op when the stream is already bf16
    xb = xb_ref[...].astype(bf16)

    # lin1 on split inputs (concat fused away): x_a @ W1a + x_b @ W1b + b1
    h = (jnp.dot(xa, w1a_ref[...], preferred_element_type=f32)
         + jnp.dot(xb, w1b_ref[...], preferred_element_type=f32)
         + b1_ref[...])
    h = jnp.maximum(h, 0.0).astype(bf16)

    h = jnp.dot(h, w2_ref[...], preferred_element_type=f32) + b2_ref[...]
    h = jnp.maximum(h, 0.0).astype(bf16)

    h = jnp.dot(h, w3_ref[...], preferred_element_type=f32) + b3_ref[...]
    h = jnp.maximum(h, 0.0).astype(bf16)

    h = jnp.dot(h, w4_ref[...], preferred_element_type=f32) + b4_ref[...]
    h = jnp.maximum(h, 0.0)                                   # (tile_e, H) f32

    # lin5 (H -> 1) as VPU multiply + lane reduction -> natural (tile_e, 1)
    # column store (output bytes are negligible: 4 B / edge).
    w5_row = w5_ref[...].astype(f32)                          # (1, H)
    score = jnp.sum(h * w5_row, axis=-1, keepdims=True)       # (tile_e, 1)
    o_ref[...] = (score + b5_ref[...]).astype(o_ref.dtype)


def prepare_params(params):
    """One-time weight prep (hoisted out of the forward path).

    Splits W1 row-wise (so the concat never materializes), casts weights to
    bf16 (MXU input dtype) and biases to f32, and reshapes W5 to a (1, H) row.
    """
    (w1, b1), (w2, b2), (w3, b3), (w4, b4), (w5, b5) = params
    H = w2.shape[0]
    bf16, f32 = jnp.bfloat16, jnp.float32
    # TODO(synk): for v5e with H not a multiple of 128, pad the HxH weights
    # (and biases / feature columns) to a 128 multiple here so the MXU does
    # not run partial K/N passes (v5e is MXU-bound for H >= ~128).
    return (
        w1[:H, :].astype(bf16), w1[H:, :].astype(bf16),
        jnp.asarray(b1, f32).reshape(1, H),
        w2.astype(bf16), jnp.asarray(b2, f32).reshape(1, H),
        w3.astype(bf16), jnp.asarray(b3, f32).reshape(1, H),
        w4.astype(bf16), jnp.asarray(b4, f32).reshape(1, H),
        w5.reshape(1, H).astype(bf16), jnp.asarray(b5, f32).reshape(1, 1),
    )


def edge_decoder_pallas(x_a, x_b, prepared_params, *, tile_e=2048):
    """x_a, x_b: (E, H) gathered author / topic features. Returns (E,) scores."""
    E, H = x_a.shape
    (w1a, w1b, b1, w2, b2, w3, b3, w4, b4, w5, b5) = prepared_params

    # --- Tile sizing --------------------------------------------------------
    # Big lane-friendly tile to amortize per-grid-step overhead ...
    tile_e = max(128, _round_up(int(tile_e), 128))
    # ... capped so there are >= 2 tiles when E allows it (v7x has 2 TCs on the
    # single "parallel" grid axis; harmless on 1-TC v5e/v6e) ...
    tile_e = min(tile_e, max(128, _round_up(max(1, -(-E // 2)), 128)))
    # ... and never much bigger than E itself (keep sublane-divisible).
    tile_e = max(8, min(tile_e, _round_up(E, 8)))
    num_tiles = -(-E // tile_e)

    # --- Derived VMEM budget (headroom under v7x's 64 MiB/TC physical) ------
    feat_bytes = 2 * 2 * tile_e * H * x_a.dtype.itemsize      # 2 inputs x 2 bufs
    out_bytes = 2 * tile_e * 4
    weight_bytes = 2 * sum(int(a.size) * a.dtype.itemsize
                           for a in (w1a, w1b, b1, w2, b2, w3, b3, w4, b4, w5, b5))
    vmem_limit = int(1.5 * (feat_bytes + out_bytes + weight_bytes)) + (8 << 20)
    vmem_limit = min(max(vmem_limit, 32 << 20), 56 << 20)

    def build(single_buffer_weights):
        if single_buffer_weights:
            # Grid-invariant blocks are DMA'd once; a single buffer halves
            # their VMEM footprint (matters for large H on v7x).
            w_kwargs = dict(pipeline_mode=pl.Buffered(1))
        else:
            w_kwargs = {}
        full = lambda shape: pl.BlockSpec(shape, lambda i: (0, 0), **w_kwargs)
        return pl.pallas_call(
            _edge_decoder_kernel,
            out_shape=jax.ShapeDtypeStruct((E, 1), jnp.float32),
            grid_spec=pltpu.PrefetchScalarGridSpec(
                num_scalar_prefetch=0,
                grid=(num_tiles,),
                in_specs=[
                    pl.BlockSpec((tile_e, H), lambda i: (i, 0)),   # author feats
                    pl.BlockSpec((tile_e, H), lambda i: (i, 0)),   # topic feats
                    full((H, H)), full((H, H)), full((1, H)),      # lin1 (split)
                    full((H, H)), full((1, H)),                    # lin2
                    full((H, H)), full((1, H)),                    # lin3
                    full((H, H)), full((1, H)),                    # lin4
                    full((1, H)), full((1, 1)),                    # lin5
                ],
                out_specs=pl.BlockSpec((tile_e, 1), lambda i: (i, 0)),
            ),
            compiler_params=pltpu.CompilerParams(
                dimension_semantics=("parallel",),
                vmem_limit_bytes=vmem_limit,
            ),
        )

    args = (x_a, x_b, w1a, w1b, b1, w2, b2, w3, b3, w4, b4, w5, b5)
    try:
        out = build(single_buffer_weights=True)(*args)
    except Exception:
        # Fallback if this Pallas build rejects pl.Buffered(1) on constant blocks.
        out = build(single_buffer_weights=False)(*args)
    return out.reshape(-1)


def edge_decoder_forward(z_dict, edge_label_index, prepared_params, *, tile_e=2048):
    """Matches EdgeDecoder.forward semantics (gather stays in plain JAX)."""
    row, col = edge_label_index
    # Cast the small node tables once BEFORE the gather so the big (E, H)
    # gathered streams are written and re-read in bf16 (halves HBM traffic).
    x_a = z_dict["author"].astype(jnp.bfloat16)[row]
    x_b = z_dict["topic"].astype(jnp.bfloat16)[col]
    # TODO(synk): for H >= ~256, fuse the gather into the kernel (scalar-prefetch
    # row/col indices + manual DMA from HBM tables) to drop these intermediates.
    return edge_decoder_pallas(x_a, x_b, prepared_params, tile_e=tile_e)


def init_params(key, hidden):
    """Deterministic Linear params: weight stored (in, out), bias (1, out)."""
    dims = [(2 * hidden, hidden),
            (hidden, hidden),
            (hidden, hidden),
            (hidden, hidden),
            (hidden, 1)]
    params = []
    for (din, dout) in dims:
        key, kw, kb = jax.random.split(key, 3)
        bound = 1.0 / jnp.sqrt(din)
        w = jax.random.uniform(kw, (din, dout), jnp.float32, -bound, bound)
        b = jax.random.uniform(kb, (1, dout), jnp.float32, -bound, bound)
        params.append((w, b))
    return params


def reference_forward(z_dict, edge_label_index, params):
    """Plain-JAX f32 reference matching the PyTorch module exactly."""
    row, col = edge_label_index
    z = jnp.concatenate(
        [z_dict["author"][row], z_dict["topic"][col]], axis=-1)
    (w1, b1), (w2, b2), (w3, b3), (w4, b4), (w5, b5) = params
    z = jax.nn.relu(z @ w1 + b1)
    z = jax.nn.relu(z @ w2 + b2)
    z = jax.nn.relu(z @ w3 + b3)
    z = jax.nn.relu(z @ w4 + b4)
    z = z @ w5 + b5
    return z.reshape(-1)


if __name__ == "__main__":
    hidden = 32
    n_author, n_topic, n_edges = 10, 12, 16

    key = jax.random.PRNGKey(0)
    k_a, k_t, k_r, k_c, k_p = jax.random.split(key, 5)

    z_dict = {
        "author": jax.random.normal(k_a, (n_author, hidden), jnp.float32),
        "topic":  jax.random.normal(k_t, (n_topic, hidden), jnp.float32),
    }
    row = jax.random.randint(k_r, (n_edges,), 0, n_author)
    col = jax.random.randint(k_c, (n_edges,), 0, n_topic)
    edge_label_index = (row, col)

    params = init_params(k_p, hidden)
    prepared = prepare_params(params)          # one-time weight prep

    out = edge_decoder_forward(z_dict, edge_label_index, prepared)
    out = jax.block_until_ready(out)

    ref = reference_forward(z_dict, edge_label_index, params)
    assert out.shape == (n_edges,)
    # Kernel runs the data path in bf16 (f32 accumulation), so compare against
    # the exact f32 reference with bf16-appropriate tolerances.
    assert jnp.allclose(out, ref, atol=5e-2, rtol=5e-2), (out, ref)

    print("KERNEL_OK")
</pallas_src>

<mosaic_0001>
module attributes {stable_mosaic.version = 11 : i64} {
  func.func @_edge_decoder_kernel(%arg0: i32, %arg1: memref<16x32xbf16, #tpu.memory_space<vmem>>, %arg2: memref<16x32xbf16, #tpu.memory_space<vmem>>, %arg3: memref<32x32xbf16, #tpu.memory_space<vmem>>, %arg4: memref<32x32xbf16, #tpu.memory_space<vmem>>, %arg5: memref<1x32xf32, #tpu.memory_space<vmem>>, %arg6: memref<32x32xbf16, #tpu.memory_space<vmem>>, %arg7: memref<1x32xf32, #tpu.memory_space<vmem>>, %arg8: memref<32x32xbf16, #tpu.memory_space<vmem>>, %arg9: memref<1x32xf32, #tpu.memory_space<vmem>>, %arg10: memref<32x32xbf16, #tpu.memory_space<vmem>>, %arg11: memref<1x32xf32, #tpu.memory_space<vmem>>, %arg12: memref<1x32xbf16, #tpu.memory_space<vmem>>, %arg13: memref<1x1xf32, #tpu.memory_space<vmem>>, %arg14: memref<16x1xf32, #tpu.memory_space<vmem>>) attributes {dimension_semantics = [#tpu.dimension_semantics<parallel>], iteration_bounds = array<i64: 1>, scalar_prefetch = 0 : i64, scratch_operands = 0 : i64, tpu.core_type = #tpu.core_type<tc>, window_params = [{transform_indices = @transform_0, window_bounds = array<i64: 16, 32>}, {transform_indices = @transform_1, window_bounds = array<i64: 16, 32>}, {pipeline_mode = #tpu.pipeline_mode<synchronous>, transform_indices = @transform_2, window_bounds = array<i64: 32, 32>}, {pipeline_mode = #tpu.pipeline_mode<synchronous>, transform_indices = @transform_3, window_bounds = array<i64: 32, 32>}, {pipeline_mode = #tpu.pipeline_mode<synchronous>, transform_indices = @transform_4, window_bounds = array<i64: 1, 32>}, {pipeline_mode = #tpu.pipeline_mode<synchronous>, transform_indices = @transform_5, window_bounds = array<i64: 32, 32>}, {pipeline_mode = #tpu.pipeline_mode<synchronous>, transform_indices = @transform_6, window_bounds = array<i64: 1, 32>}, {pipeline_mode = #tpu.pipeline_mode<synchronous>, transform_indices = @transform_7, window_bounds = array<i64: 32, 32>}, {pipeline_mode = #tpu.pipeline_mode<synchronous>, transform_indices = @transform_8, window_bounds = array<i64: 1, 32>}, {pipeline_mode = #tpu.pipeline_mode<synchronous>, transform_indices = @transform_9, window_bounds = array<i64: 32, 32>}, {pipeline_mode = #tpu.pipeline_mode<synchronous>, transform_indices = @transform_10, window_bounds = array<i64: 1, 32>}, {pipeline_mode = #tpu.pipeline_mode<synchronous>, transform_indices = @transform_11, window_bounds = array<i64: 1, 32>}, {pipeline_mode = #tpu.pipeline_mode<synchronous>, transform_indices = @transform_12, window_bounds = array<i64: 1, 1>}, {transform_indices = @transform_13, window_bounds = array<i64: 16, 1>}]} {
    %c0 = arith.constant 0 : index
    %c0_0 = arith.constant 0 : index
    %0 = vector.load %arg1[%c0, %c0_0] : memref<16x32xbf16, #tpu.memory_space<vmem>>, vector<16x32xbf16>
    %c0_1 = arith.constant 0 : index
    %c0_2 = arith.constant 0 : index
    %1 = vector.load %arg2[%c0_1, %c0_2] : memref<16x32xbf16, #tpu.memory_space<vmem>>, vector<16x32xbf16>
    %c0_3 = arith.constant 0 : index
    %c0_4 = arith.constant 0 : index
    %2 = vector.load %arg3[%c0_3, %c0_4] : memref<32x32xbf16, #tpu.memory_space<vmem>>, vector<32x32xbf16>
    %cst = arith.constant dense<0.000000e+00> : vector<16x32xf32>
    %3 = tpu.matmul %0, %2, %cst {dimension_numbers = #tpu.dot_dimension_numbers<[1], [0], [0], [1], [0, 0, 1, 1], [], []>} : vector<16x32xbf16>, vector<32x32xbf16>, vector<16x32xf32> -> vector<16x32xf32>
    %c0_5 = arith.constant 0 : index
    %c0_6 = arith.constant 0 : index
    %4 = vector.load %arg4[%c0_5, %c0_6] : memref<32x32xbf16, #tpu.memory_space<vmem>>, vector<32x32xbf16>
    %cst_7 = arith.constant dense<0.000000e+00> : vector<16x32xf32>
    %5 = tpu.matmul %1, %4, %cst_7 {dimension_numbers = #tpu.dot_dimension_numbers<[1], [0], [0], [1], [0, 0, 1, 1], [], []>} : vector<16x32xbf16>, vector<32x32xbf16>, vector<16x32xf32> -> vector<16x32xf32>
    %6 = arith.addf %3, %5 : vector<16x32xf32>
    %c0_8 = arith.constant 0 : index
    %c0_9 = arith.constant 0 : index
    %7 = vector.load %arg5[%c0_8, %c0_9] : memref<1x32xf32, #tpu.memory_space<vmem>>, vector<1x32xf32>
    %8 = vector.broadcast %7 : vector<1x32xf32> to vector<16x32xf32>
    %9 = arith.addf %6, %8 : vector<16x32xf32>
    %cst_10 = arith.constant 0.000000e+00 : f32
    %10 = vector.broadcast %cst_10 : f32 to vector<16x32xf32>
    %11 = arith.maximumf %9, %10 : vector<16x32xf32>
    %12 = arith.truncf %11 : vector<16x32xf32> to vector<16x32xbf16>
    %c0_11 = arith.constant 0 : index
    %c0_12 = arith.constant 0 : index
    %13 = vector.load %arg6[%c0_11, %c0_12] : memref<32x32xbf16, #tpu.memory_space<vmem>>, vector<32x32xbf16>
    %cst_13 = arith.constant dense<0.000000e+00> : vector<16x32xf32>
    %14 = tpu.matmul %12, %13, %cst_13 {dimension_numbers = #tpu.dot_dimension_numbers<[1], [0], [0], [1], [0, 0, 1, 1], [], []>} : vector<16x32xbf16>, vector<32x32xbf16>, vector<16x32xf32> -> vector<16x32xf32>
    %c0_14 = arith.constant 0 : index
    %c0_15 = arith.constant 0 : index
    %15 = vector.load %arg7[%c0_14, %c0_15] : memref<1x32xf32, #tpu.memory_space<vmem>>, vector<1x32xf32>
    %16 = vector.broadcast %15 : vector<1x32xf32> to vector<16x32xf32>
    %17 = arith.addf %14, %16 : vector<16x32xf32>
    %cst_16 = arith.constant 0.000000e+00 : f32
    %18 = vector.broadcast %cst_16 : f32 to vector<16x32xf32>
    %19 = arith.maximumf %17, %18 : vector<16x32xf32>
    %20 = arith.truncf %19 : vector<16x32xf32> to vector<16x32xbf16>
    %c0_17 = arith.constant 0 : index
    %c0_18 = arith.constant 0 : index
    %21 = vector.load %arg8[%c0_17, %c0_18] : memref<32x32xbf16, #tpu.memory_space<vmem>>, vector<32x32xbf16>
    %cst_19 = arith.constant dense<0.000000e+00> : vector<16x32xf32>
    %22 = tpu.matmul %20, %21, %cst_19 {dimension_numbers = #tpu.dot_dimension_numbers<[1], [0], [0], [1], [0, 0, 1, 1], [], []>} : vector<16x32xbf16>, vector<32x32xbf16>, vector<16x32xf32> -> vector<16x32xf32>
    %c0_20 = arith.constant 0 : index
    %c0_21 = arith.constant 0 : index
    %23 = vector.load %arg9[%c0_20, %c0_21] : memref<1x32xf32, #tpu.memory_space<vmem>>, vector<1x32xf32>
    %24 = vector.broadcast %23 : vector<1x32xf32> to vector<16x32xf32>
    %25 = arith.addf %22, %24 : vector<16x32xf32>
    %cst_22 = arith.constant 0.000000e+00 : f32
    %26 = vector.broadcast %cst_22 : f32 to vector<16x32xf32>
    %27 = arith.maximumf %25, %26 : vector<16x32xf32>
    %28 = arith.truncf %27 : vector<16x32xf32> to vector<16x32xbf16>
    %c0_23 = arith.constant 0 : index
    %c0_24 = arith.constant 0 : index
    %29 = vector.load %arg10[%c0_23, %c0_24] : memref<32x32xbf16, #tpu.memory_space<vmem>>, vector<32x32xbf16>
    %cst_25 = arith.constant dense<0.000000e+00> : vector<16x32xf32>
    %30 = tpu.matmul %28, %29, %cst_25 {dimension_numbers = #tpu.dot_dimension_numbers<[1], [0], [0], [1], [0, 0, 1, 1], [], []>} : vector<16x32xbf16>, vector<32x32xbf16>, vector<16x32xf32> -> vector<16x32xf32>
    %c0_26 = arith.constant 0 : index
    %c0_27 = arith.constant 0 : index
    %31 = vector.load %arg11[%c0_26, %c0_27] : memref<1x32xf32, #tpu.memory_space<vmem>>, vector<1x32xf32>
    %32 = vector.broadcast %31 : vector<1x32xf32> to vector<16x32xf32>
    %33 = arith.addf %30, %32 : vector<16x32xf32>
    %cst_28 = arith.constant 0.000000e+00 : f32
    %34 = vector.broadcast %cst_28 : f32 to vector<16x32xf32>
    %35 = arith.maximumf %33, %34 : vector<16x32xf32>
    %c0_29 = arith.constant 0 : index
    %c0_30 = arith.constant 0 : index
    %36 = vector.load %arg12[%c0_29, %c0_30] : memref<1x32xbf16, #tpu.memory_space<vmem>>, vector<1x32xbf16>
    %37 = arith.extf %36 : vector<1x32xbf16> to vector<1x32xf32>
    %38 = vector.broadcast %37 : vector<1x32xf32> to vector<16x32xf32>
    %39 = arith.mulf %35, %38 : vector<16x32xf32>
    %cst_31 = arith.constant dense<0.000000e+00> : vector<16xf32>
    %40 = vector.multi_reduction <add>, %39, %cst_31 [1] : vector<16x32xf32> to vector<16xf32>
    %41 = vector.shape_cast %40 : vector<16xf32> to vector<16x1xf32>
    %c0_32 = arith.constant 0 : index
    %c0_33 = arith.constant 0 : index
    %42 = vector.load %arg13[%c0_32, %c0_33] : memref<1x1xf32, #tpu.memory_space<vmem>>, vector<1x1xf32>
    %43 = vector.broadcast %42 : vector<1x1xf32> to vector<16x1xf32>
    %44 = arith.addf %41, %43 : vector<16x1xf32>
    %c0_34 = arith.constant 0 : index
    %c0_35 = arith.constant 0 : index
    %45 = vector.load %arg14[%c0_34, %c0_35] : memref<16x1xf32, #tpu.memory_space<vmem>>, vector<16x1xf32>
    tpu.vector_store %arg14[%c0_34, %c0_35], %44 {strides = array<i32>} : memref<16x1xf32, #tpu.memory_space<vmem>>, vector<16x1xf32>,
    return
  }
  func.func @transform_0(%arg0: i32) -> (i32, i32) {
    %c0_i32 = arith.constant 0 : i32
    %c0_i32_0 = arith.constant 0 : i32
    return %arg0, %c0_i32 : i32, i32
  }
  func.func @transform_1(%arg0: i32) -> (i32, i32) {
    %c0_i32 = arith.constant 0 : i32
    %c0_i32_0 = arith.constant 0 : i32
    return %arg0, %c0_i32 : i32, i32
  }
  func.func @transform_2(%arg0: i32) -> (i32, i32) {
    %c0_i32 = arith.constant 0 : i32
    %c0_i32_0 = arith.constant 0 : i32
    %c0_i32_1 = arith.constant 0 : i32
    return %c0_i32, %c0_i32_0 : i32, i32
  }
  func.func @transform_3(%arg0: i32) -> (i32, i32) {
    %c0_i32 = arith.constant 0 : i32
    %c0_i32_0 = arith.constant 0 : i32
    %c0_i32_1 = arith.constant 0 : i32
    return %c0_i32, %c0_i32_0 : i32, i32
  }
  func.func @transform_4(%arg0: i32) -> (i32, i32) {
    %c0_i32 = arith.constant 0 : i32
    %c0_i32_0 = arith.constant 0 : i32
    %c0_i32_1 = arith.constant 0 : i32
    return %c0_i32, %c0_i32_0 : i32, i32
  }
  func.func @transform_5(%arg0: i32) -> (i32, i32) {
    %c0_i32 = arith.constant 0 : i32
    %c0_i32_0 = arith.constant 0 : i32
    %c0_i32_1 = arith.constant 0 : i32
    return %c0_i32, %c0_i32_0 : i32, i32
  }
  func.func @transform_6(%arg0: i32) -> (i32, i32) {
    %c0_i32 = arith.constant 0 : i32
    %c0_i32_0 = arith.constant 0 : i32
    %c0_i32_1 = arith.constant 0 : i32
    return %c0_i32, %c0_i32_0 : i32, i32
  }
  func.func @transform_7(%arg0: i32) -> (i32, i32) {
    %c0_i32 = arith.constant 0 : i32
    %c0_i32_0 = arith.constant 0 : i32
    %c0_i32_1 = arith.constant 0 : i32
    return %c0_i32, %c0_i32_0 : i32, i32
  }
  func.func @transform_8(%arg0: i32) -> (i32, i32) {
    %c0_i32 = arith.constant 0 : i32
    %c0_i32_0 = arith.constant 0 : i32
    %c0_i32_1 = arith.constant 0 : i32
    return %c0_i32, %c0_i32_0 : i32, i32
  }
  func.func @transform_9(%arg0: i32) -> (i32, i32) {
    %c0_i32 = arith.constant 0 : i32
    %c0_i32_0 = arith.constant 0 : i32
    %c0_i32_1 = arith.constant 0 : i32
    return %c0_i32, %c0_i32_0 : i32, i32
  }
  func.func @transform_10(%arg0: i32) -> (i32, i32) {
    %c0_i32 = arith.constant 0 : i32
    %c0_i32_0 = arith.constant 0 : i32
    %c0_i32_1 = arith.constant 0 : i32
    return %c0_i32, %c0_i32_0 : i32, i32
  }
  func.func @transform_11(%arg0: i32) -> (i32, i32) {
    %c0_i32 = arith.constant 0 : i32
    %c0_i32_0 = arith.constant 0 : i32
    %c0_i32_1 = arith.constant 0 : i32
    return %c0_i32, %c0_i32_0 : i32, i32
  }
  func.func @transform_12(%arg0: i32) -> (i32, i32) {
    %c0_i32 = arith.constant 0 : i32
    %c0_i32_0 = arith.constant 0 : i32
    %c0_i32_1 = arith.constant 0 : i32
    return %c0_i32, %c0_i32_0 : i32, i32
  }
  func.func @transform_13(%arg0: i32) -> (i32, i32) {
    %c0_i32 = arith.constant 0 : i32
    %c0_i32_0 = arith.constant 0 : i32
    return %arg0, %c0_i32 : i32, i32
  }
}

module attributes {stable_mosaic.version = 11 : i64} {
  func.func @_edge_decoder_kernel(%arg0: i32, %arg1: memref<16x32xbf16, #tpu.memory_space<vmem>>, %arg2: memref<16x32xbf16, #tpu.memory_space<vmem>>, %arg3: memref<32x32xbf16, #tpu.memory_space<vmem>>, %arg4: memref<32x32xbf16, #tpu.memory_space<vmem>>, %arg5: memref<1x32xf32, #tpu.memory_space<vmem>>, %arg6: memref<32x32xbf16, #tpu.memory_space<vmem>>, %arg7: memref<1x32xf32, #tpu.memory_space<vmem>>, %arg8: memref<32x32xbf16, #tpu.memory_space<vmem>>, %arg9: memref<1x32xf32, #tpu.memory_space<vmem>>, %arg10: memref<32x32xbf16, #tpu.memory_space<vmem>>, %arg11: memref<1x32xf32, #tpu.memory_space<vmem>>, %arg12: memref<1x32xbf16, #tpu.memory_space<vmem>>, %arg13: memref<1x1xf32, #tpu.memory_space<vmem>>, %arg14: memref<16x1xf32, #tpu.memory_space<vmem>>) attributes {dimension_semantics = [#tpu.dimension_semantics<parallel>], iteration_bounds = array<i64: 1>, scalar_prefetch = 0 : i64, scratch_operands = 0 : i64, tpu.core_type = #tpu.core_type<tc>, window_params = [{transform_indices = @transform_0, window_bounds = array<i64: 16, 32>}, {transform_indices = @transform_1, window_bounds = array<i64: 16, 32>}, {pipeline_mode = #tpu.pipeline_mode<synchronous>, transform_indices = @transform_2, window_bounds = array<i64: 32, 32>}, {pipeline_mode = #tpu.pipeline_mode<synchronous>, transform_indices = @transform_3, window_bounds = array<i64: 32, 32>}, {pipeline_mode = #tpu.pipeline_mode<synchronous>, transform_indices = @transform_4, window_bounds = array<i64: 1, 32>}, {pipeline_mode = #tpu.pipeline_mode<synchronous>, transform_indices = @transform_5, window_bounds = array<i64: 32, 32>}, {pipeline_mode = #tpu.pipeline_mode<synchronous>, transform_indices = @transform_6, window_bounds = array<i64: 1, 32>}, {pipeline_mode = #tpu.pipeline_mode<synchronous>, transform_indices = @transform_7, window_bounds = array<i64: 32, 32>}, {pipeline_mode = #tpu.pipeline_mode<synchronous>, transform_indices = @transform_8, window_bounds = array<i64: 1, 32>}, {pipeline_mode = #tpu.pipeline_mode<synchronous>, transform_indices = @transform_9, window_bounds = array<i64: 32, 32>}, {pipeline_mode = #tpu.pipeline_mode<synchronous>, transform_indices = @transform_10, window_bounds = array<i64: 1, 32>}, {pipeline_mode = #tpu.pipeline_mode<synchronous>, transform_indices = @transform_11, window_bounds = array<i64: 1, 32>}, {pipeline_mode = #tpu.pipeline_mode<synchronous>, transform_indices = @transform_12, window_bounds = array<i64: 1, 1>}, {transform_indices = @transform_13, window_bounds = array<i64: 16, 1>}]} {
    %c0 = arith.constant 0 : index
    %c0_0 = arith.constant 0 : index
    %0 = vector.load %arg1[%c0, %c0_0] : memref<16x32xbf16, #tpu.memory_space<vmem>>, vector<16x32xbf16>
    %c0_1 = arith.constant 0 : index
    %c0_2 = arith.constant 0 : index
    %1 = vector.load %arg2[%c0_1, %c0_2] : memref<16x32xbf16, #tpu.memory_space<vmem>>, vector<16x32xbf16>
    %c0_3 = arith.constant 0 : index
    %c0_4 = arith.constant 0 : index
    %2 = vector.load %arg3[%c0_3, %c0_4] : memref<32x32xbf16, #tpu.memory_space<vmem>>, vector<32x32xbf16>
    %cst = arith.constant dense<0.000000e+00> : vector<16x32xf32>
    %3 = tpu.matmul %0, %2, %cst {dimension_numbers = #tpu.dot_dimension_numbers<[1], [0], [0], [1], [0, 0, 1, 1], [], []>} : vector<16x32xbf16>, vector<32x32xbf16>, vector<16x32xf32> -> vector<16x32xf32>
    %c0_5 = arith.constant 0 : index
    %c0_6 = arith.constant 0 : index
    %4 = vector.load %arg4[%c0_5, %c0_6] : memref<32x32xbf16, #tpu.memory_space<vmem>>, vector<32x32xbf16>
    %cst_7 = arith.constant dense<0.000000e+00> : vector<16x32xf32>
    %5 = tpu.matmul %1, %4, %cst_7 {dimension_numbers = #tpu.dot_dimension_numbers<[1], [0], [0], [1], [0, 0, 1, 1], [], []>} : vector<16x32xbf16>, vector<32x32xbf16>, vector<16x32xf32> -> vector<16x32xf32>
    %6 = arith.addf %3, %5 : vector<16x32xf32>
    %c0_8 = arith.constant 0 : index
    %c0_9 = arith.constant 0 : index
    %7 = vector.load %arg5[%c0_8, %c0_9] : memref<1x32xf32, #tpu.memory_space<vmem>>, vector<1x32xf32>
    %8 = vector.broadcast %7 : vector<1x32xf32> to vector<16x32xf32>
    %9 = arith.addf %6, %8 : vector<16x32xf32>
    %cst_10 = arith.constant 0.000000e+00 : f32
    %10 = vector.broadcast %cst_10 : f32 to vector<16x32xf32>
    %11 = arith.maximumf %9, %10 : vector<16x32xf32>
    %12 = arith.truncf %11 : vector<16x32xf32> to vector<16x32xbf16>
    %c0_11 = arith.constant 0 : index
    %c0_12 = arith.constant 0 : index
    %13 = vector.load %arg6[%c0_11, %c0_12] : memref<32x32xbf16, #tpu.memory_space<vmem>>, vector<32x32xbf16>
    %cst_13 = arith.constant dense<0.000000e+00> : vector<16x32xf32>
    %14 = tpu.matmul %12, %13, %cst_13 {dimension_numbers = #tpu.dot_dimension_numbers<[1], [0], [0], [1], [0, 0, 1, 1], [], []>} : vector<16x32xbf16>, vector<32x32xbf16>, vector<16x32xf32> -> vector<16x32xf32>
    %c0_14 = arith.constant 0 : index
    %c0_15 = arith.constant 0 : index
    %15 = vector.load %arg7[%c0_14, %c0_15] : memref<1x32xf32, #tpu.memory_space<vmem>>, vector<1x32xf32>
    %16 = vector.broadcast %15 : vector<1x32xf32> to vector<16x32xf32>
    %17 = arith.addf %14, %16 : vector<16x32xf32>
    %cst_16 = arith.constant 0.000000e+00 : f32
    %18 = vector.broadcast %cst_16 : f32 to vector<16x32xf32>
    %19 = arith.maximumf %17, %18 : vector<16x32xf32>
    %20 = arith.truncf %19 : vector<16x32xf32> to vector<16x32xbf16>
    %c0_17 = arith.constant 0 : index
    %c0_18 = arith.constant 0 : index
    %21 = vector.load %arg8[%c0_17, %c0_18] : memref<32x32xbf16, #tpu.memory_space<vmem>>, vector<32x32xbf16>
    %cst_19 = arith.constant dense<0.000000e+00> : vector<16x32xf32>
    %22 = tpu.matmul %20, %21, %cst_19 {dimension_numbers = #tpu.dot_dimension_numbers<[1], [0], [0], [1], [0, 0, 1, 1], [], []>} : vector<16x32xbf16>, vector<32x32xbf16>, vector<16x32xf32> -> vector<16x32xf32>
    %c0_20 = arith.constant 0 : index
    %c0_21 = arith.constant 0 : index
    %23 = vector.load %arg9[%c0_20, %c0_21] : memref<1x32xf32, #tpu.memory_space<vmem>>, vector<1x32xf32>
    %24 = vector.broadcast %23 : vector<1x32xf32> to vector<16x32xf32>
    %25 = arith.addf %22, %24 : vector<16x32xf32>
    %cst_22 = arith.constant 0.000000e+00 : f32
    %26 = vector.broadcast %cst_22 : f32 to vector<16x32xf32>
    %27 = arith.maximumf %25, %26 : vector<16x32xf32>
    %28 = arith.truncf %27 : vector<16x32xf32> to vector<16x32xbf16>
    %c0_23 = arith.constant 0 : index
    %c0_24 = arith.constant 0 : index
    %29 = vector.load %arg10[%c0_23, %c0_24] : memref<32x32xbf16, #tpu.memory_space<vmem>>, vector<32x32xbf16>
    %cst_25 = arith.constant dense<0.000000e+00> : vector<16x32xf32>
    %30 = tpu.matmul %28, %29, %cst_25 {dimension_numbers = #tpu.dot_dimension_numbers<[1], [0], [0], [1], [0, 0, 1, 1], [], []>} : vector<16x32xbf16>, vector<32x32xbf16>, vector<16x32xf32> -> vector<16x32xf32>
    %c0_26 = arith.constant 0 : index
    %c0_27 = arith.constant 0 : index
    %31 = vector.load %arg11[%c0_26, %c0_27] : memref<1x32xf32, #tpu.memory_space<vmem>>, vector<1x32xf32>
    %32 = vector.broadcast %31 : vector<1x32xf32> to vector<16x32xf32>
    %33 = arith.addf %30, %32 : vector<16x32xf32>
    %cst_28 = arith.constant 0.000000e+00 : f32
    %34 = vector.broadcast %cst_28 : f32 to vector<16x32xf32>
    %35 = arith.maximumf %33, %34 : vector<16x32xf32>
    %c0_29 = arith.constant 0 : index
    %c0_30 = arith.constant 0 : index
    %36 = vector.load %arg12[%c0_29, %c0_30] : memref<1x32xbf16, #tpu.memory_space<vmem>>, vector<1x32xbf16>
    %37 = arith.extf %36 : vector<1x32xbf16> to vector<1x32xf32>
    %38 = vector.broadcast %37 : vector<1x32xf32> to vector<16x32xf32>
    %39 = arith.mulf %35, %38 : vector<16x32xf32>
    %cst_31 = arith.constant dense<0.000000e+00> : vector<16xf32>
    %40 = vector.multi_reduction <add>, %39, %cst_31 [1] : vector<16x32xf32> to vector<16xf32>
    %41 = vector.shape_cast %40 : vector<16xf32> to vector<16x1xf32>
    %c0_32 = arith.constant 0 : index
    %c0_33 = arith.constant 0 : index
    %42 = vector.load %arg13[%c0_32, %c0_33] : memref<1x1xf32, #tpu.memory_space<vmem>>, vector<1x1xf32>
    %43 = vector.broadcast %42 : vector<1x1xf32> to vector<16x1xf32>
    %44 = arith.addf %41, %43 : vector<16x1xf32>
    %c0_34 = arith.constant 0 : index
    %c0_35 = arith.constant 0 : index
    %45 = vector.load %arg14[%c0_34, %c0_35] : memref<16x1xf32, #tpu.memory_space<vmem>>, vector<16x1xf32>
    tpu.vector_store %arg14[%c0_34, %c0_35], %44 {strides = array<i32>} : memref<16x1xf32, #tpu.memory_space<vmem>>, vector<16x1xf32>,
    return
  }
  func.func @transform_0(%arg0: i32) -> (i32, i32) {
    %c0_i32 = arith.constant 0 : i32
    %c0_i32_0 = arith.constant 0 : i32
    return %arg0, %c0_i32 : i32, i32
  }
  func.func @transform_1(%arg0: i32) -> (i32, i32) {
    %c0_i32 = arith.constant 0 : i32
    %c0_i32_0 = arith.constant 0 : i32
    return %arg0, %c0_i32 : i32, i32
  }
  func.func @transform_2(%arg0: i32) -> (i32, i32) {
    %c0_i32 = arith.constant 0 : i32
    %c0_i32_0 = arith.constant 0 : i32
    %c0_i32_1 = arith.constant 0 : i32
    return %c0_i32, %c0_i32_0 : i32, i32
  }
  func.func @transform_3(%arg0: i32) -> (i32, i32) {
    %c0_i32 = arith.constant 0 : i32
    %c0_i32_0 = arith.constant 0 : i32
    %c0_i32_1 = arith.constant 0 : i32
    return %c0_i32, %c0_i32_0 : i32, i32
  }
  func.func @transform_4(%arg0: i32) -> (i32, i32) {
    %c0_i32 = arith.constant 0 : i32
    %c0_i32_0 = arith.constant 0 : i32
    %c0_i32_1 = arith.constant 0 : i32
    return %c0_i32, %c0_i32_0 : i32, i32
  }
  func.func @transform_5(%arg0: i32) -> (i32, i32) {
    %c0_i32 = arith.constant 0 : i32
    %c0_i32_0 = arith.constant 0 : i32
    %c0_i32_1 = arith.constant 0 : i32
    return %c0_i32, %c0_i32_0 : i32, i32
  }
  func.func @transform_6(%arg0: i32) -> (i32, i32) {
    %c0_i32 = arith.constant 0 : i32
    %c0_i32_0 = arith.constant 0 : i32
    %c0_i32_1 = arith.constant 0 : i32
    return %c0_i32, %c0_i32_0 : i32, i32
  }
  func.func @transform_7(%arg0: i32) -> (i32, i32) {
    %c0_i32 = arith.constant 0 : i32
    %c0_i32_0 = arith.constant 0 : i32
    %c0_i32_1 = arith.constant 0 : i32
    return %c0_i32, %c0_i32_0 : i32, i32
  }
  func.func @transform_8(%arg0: i32) -> (i32, i32) {
    %c0_i32 = arith.constant 0 : i32
    %c0_i32_0 = arith.constant 0 : i32
    %c0_i32_1 = arith.constant 0 : i32
    return %c0_i32, %c0_i32_0 : i32, i32
  }
  func.func @transform_9(%arg0: i32) -> (i32, i32) {
    %c0_i32 = arith.constant 0 : i32
    %c0_i32_0 = arith.constant 0 : i32
    %c0_i32_1 = arith.constant 0 : i32
    return %c0_i32, %c0_i32_0 : i32, i32
  }
  func.func @transform_10(%arg0: i32) -> (i32, i32) {
    %c0_i32 = arith.constant 0 : i32
    %c0_i32_0 = arith.constant 0 : i32
    %c0_i32_1 = arith.constant 0 : i32
    return %c0_i32, %c0_i32_0 : i32, i32
  }
  func.func @transform_11(%arg0: i32) -> (i32, i32) {
    %c0_i32 = arith.constant 0 : i32
    %c0_i32_0 = arith.constant 0 : i32
    %c0_i32_1 = arith.constant 0 : i32
    return %c0_i32, %c0_i32_0 : i32, i32
  }
  func.func @transform_12(%arg0: i32) -> (i32, i32) {
    %c0_i32 = arith.constant 0 : i32
    %c0_i32_0 = arith.constant 0 : i32
    %c0_i32_1 = arith.constant 0 : i32
    return %c0_i32, %c0_i32_0 : i32, i32
  }
  func.func @transform_13(%arg0: i32) -> (i32, i32) {
    %c0_i32 = arith.constant 0 : i32
    %c0_i32_0 = arith.constant 0 : i32
    return %arg0, %c0_i32 : i32, i32
  }
}

</mosaic_0001>

<llo_original>
// kernel: tpu_custom_call.1
$region0: #{tpu_custom_call.1}
  #allocation0 [shape = 'u32[]', space=smem, size = 0x4, offset = 0x4, fixed_abs, tag = 'smem constant byte address 0x4 - core index']
  #allocation1 [shape = 'u32[144,128]{1,0:T(1,128)}', space=vmem, size = 0x12000, scoped, tag = 'internal scratch']
  #allocation2 [shape = 'f32[1,1]{1,0:T(1,128)S(1)}', space=vmem, size = 0x200, scoped, tag = 'scoped memory for tpu_custom_call.1']
  %s0 = inlined_call_operand.hbm [shape: bf16[16,32], index: 0, kind: input, shape index: {}]
  %s1 = inlined_call_operand.hbm [shape: bf16[16,32], index: 1, kind: input, shape index: {}]
  %s2 = inlined_call_operand.hbm [shape: bf16[32,32], index: 2, kind: input, shape index: {}]
  %s3 = inlined_call_operand.hbm [shape: bf16[32,32], index: 3, kind: input, shape index: {}]
  %s4 = inlined_call_operand.vmem [shape: f32[1,32], index: 4, kind: input, shape index: {}]
  %s5 = inlined_call_operand.vmem [shape: bf16[32,32], index: 5, kind: input, shape index: {}]
  %s6 = inlined_call_operand.vmem [shape: f32[1,32], index: 6, kind: input, shape index: {}]
  %s7 = inlined_call_operand.hbm [shape: bf16[32,32], index: 7, kind: input, shape index: {}]
  %s8 = inlined_call_operand.hbm [shape: f32[1,32], index: 8, kind: input, shape index: {}]
  %s9 = inlined_call_operand.vmem [shape: bf16[32,32], index: 9, kind: input, shape index: {}]
  %s10 = inlined_call_operand.vmem [shape: f32[1,32], index: 10, kind: input, shape index: {}]
  %s11 = inlined_call_operand.vmem [shape: bf16[1,32], index: 11, kind: input, shape index: {}]
  %s12 = inlined_call_operand.<no memory space> [shape: f32[1,1], index: 12, kind: input, shape index: {}]
  %s13 = inlined_call_operand.vmem [shape: f32[16,1], index: 13, kind: output, shape index: {}]
  %s14 = sld [smem:[#allocation0]]
  $region86: #{tpu_custom_call.1} parent=0
    _
  %s16 = ssub.s32 1, %s14
  %s17 = scalar_select 0, %s16, %s14
  %v18 = vstv %s12
  %19 = vst [vmem:[#allocation2] sm:$0x1] %v18
  $region1: #{tpu_custom_call.1} parent=0
    #allocation3 [shape = 'u8[4096]{0}', space=vmem, size = 0x1000, scoped, tag = 'input window, operand 0, single buffered']
    #allocation4 [shape = 's32[1]{0}', space=sflag, size = 0x4, scoped, tag = 'scoped memory for tpu_custom_call.1']
    #allocation5 [shape = 'u8[4096]{0}', space=vmem, size = 0x1000, scoped, tag = 'input window, operand 1, single buffered']
    #allocation6 [shape = 's32[1]{0}', space=sflag, size = 0x4, scoped, tag = 'scoped memory for tpu_custom_call.1']
    #allocation7 [shape = 'u8[8192]{0}', space=vmem, size = 0x2000, scoped, tag = 'input window, operand 2, single buffered']
    #allocation8 [shape = 'u8[8192]{0}', space=vmem, size = 0x2000, scoped, tag = 'input window, operand 3, single buffered']
    #allocation9 [shape = 's32[1]{0}', space=sflag, size = 0x4, scoped, tag = 'scoped memory for tpu_custom_call.1']
    #allocation10 [shape = 'u8[8192]{0}', space=vmem, size = 0x2000, scoped, tag = 'input window, operand 7, single buffered']
    #allocation11 [shape = 'u8[512]{0}', space=vmem, size = 0x400, scoped, tag = 'input window, operand 8, single buffered']
    #allocation12 [shape = 's32[1]{0}', space=sflag, size = 0x4, scoped, tag = 'scoped memory for tpu_custom_call.1']
    %20 = vsyncpa [#allocation4], 0
    %21 = vsyncpa [#allocation6], 0
    %22 = vsyncpa [#allocation9], 0
    %23 = vsyncpa [#allocation12], 0
    // Predicated region
    $region2: #{tpu_custom_call.1} parent=1 // pred_check
      _
    $region3: #{tpu_custom_call.1} parent=1 // pred_check_branch
      %25 = sbr.rel (0) target = $region5
    $region4: #{tpu_custom_call.1} parent=1 // pred_region
      %s27 = ssub.s32 128, 128
      %28 = vsyncadd [#allocation4], %s27
      %s29 = sshll.u32 [#allocation3], 4
      %s30 = int_to_ptr.vmem [resolvable:$true] %s29
      %35 = dma.hbm_to_vmem [thread:$0]  %s0, 128, %s30, [#allocation4], 64, 64, 4
    $region5: #{tpu_custom_call.1} parent=1 // pred_fallthru
      _
    // Predicated region
    $region6: #{tpu_custom_call.1} parent=1 // pred_check
      _
    $region7: #{tpu_custom_call.1} parent=1 // pred_check_branch
      %37 = sbr.rel (0) target = $region9
    $region8: #{tpu_custom_call.1} parent=1 // pred_region
      %s39 = ssub.s32 128, 128
      %40 = vsyncadd [#allocation6], %s39
      %s41 = sshll.u32 [#allocation5], 4
      %s42 = int_to_ptr.vmem [resolvable:$true] %s41
      %47 = dma.hbm_to_vmem [thread:$0]  %s1, 128, %s42, [#allocation6], 64, 64, 4
    $region9: #{tpu_custom_call.1} parent=1 // pred_fallthru
      _
    // Predicated region
    $region10: #{tpu_custom_call.1} parent=1 // pred_check
      _
    $region11: #{tpu_custom_call.1} parent=1 // pred_check_branch
      %49 = sbr.rel (0) target = $region13
    $region12: #{tpu_custom_call.1} parent=1 // pred_region
      %s51 = ssub.s32 256, 256
      %52 = vsyncadd [#allocation6], %s51
      %s53 = sshll.u32 [#allocation7], 4
      %s54 = int_to_ptr.vmem [resolvable:$true] %s53
      %59 = dma.hbm_to_vmem [thread:$0]  %s2, 256, %s54, [#allocation6], 64, 64, 4
    $region13: #{tpu_custom_call.1} parent=1 // pred_fallthru
      _
    // Predicated region
    $region14: #{tpu_custom_call.1} parent=1 // pred_check
      _
    $region15: #{tpu_custom_call.1} parent=1 // pred_check_branch
      %61 = sbr.rel (0) target = $region17
    $region16: #{tpu_custom_call.1} parent=1 // pred_region
      %s63 = ssub.s32 256, 256
      %64 = vsyncadd [#allocation9], %s63
      %s65 = sshll.u32 [#allocation8], 4
      %s66 = int_to_ptr.vmem [resolvable:$true] %s65
      %71 = dma.hbm_to_vmem [thread:$0]  %s3, 256, %s66, [#allocation9], 64, 64, 4
    $region17: #{tpu_custom_call.1} parent=1 // pred_fallthru
      _
    // Predicated region
    $region18: #{tpu_custom_call.1} parent=1 // pred_check
      _
    $region19: #{tpu_custom_call.1} parent=1 // pred_check_branch
      %73 = sbr.rel (0) target = $region21
    $region20: #{tpu_custom_call.1} parent=1 // pred_region
      _
    $region21: #{tpu_custom_call.1} parent=1 // pred_fallthru
      _
    // Predicated region
    $region22: #{tpu_custom_call.1} parent=1 // pred_check
      _
    $region23: #{tpu_custom_call.1} parent=1 // pred_check_branch
      %75 = sbr.rel (0) target = $region25
    $region24: #{tpu_custom_call.1} parent=1 // pred_region
      _
    $region25: #{tpu_custom_call.1} parent=1 // pred_fallthru
      _
    // Predicated region
    $region26: #{tpu_custom_call.1} parent=1 // pred_check
      _
    $region27: #{tpu_custom_call.1} parent=1 // pred_check_branch
      %77 = sbr.rel (0) target = $region29
    $region28: #{tpu_custom_call.1} parent=1 // pred_region
      _
    $region29: #{tpu_custom_call.1} parent=1 // pred_fallthru
      _
    // Predicated region
    $region30: #{tpu_custom_call.1} parent=1 // pred_check
      _
    $region31: #{tpu_custom_call.1} parent=1 // pred_check_branch
      %79 = sbr.rel (0) target = $region33
    $region32: #{tpu_custom_call.1} parent=1 // pred_region
      %s81 = ssub.s32 256, 256
      %82 = vsyncadd [#allocation9], %s81
      %s83 = sshll.u32 [#allocation10], 4
      %s84 = int_to_ptr.vmem [resolvable:$true] %s83
      %89 = dma.hbm_to_vmem [thread:$0]  %s7, 256, %s84, [#allocation9], 64, 64, 4
    $region33: #{tpu_custom_call.1} parent=1 // pred_fallthru
      _
    // Predicated region
    $region34: #{tpu_custom_call.1} parent=1 // pred_check
      _
    $region35: #{tpu_custom_call.1} parent=1 // pred_check_branch
      %91 = sbr.rel (0) target = $region37
    $region36: #{tpu_custom_call.1} parent=1 // pred_region
      %s93 = ssub.s32 16, 16
      %94 = vsyncadd [#allocation12], %s93
      %s96 = sshll.u32 [#allocation11], 4
      %s97 = int_to_ptr.vmem [resolvable:$true] %s96
      %99 = dma.hbm_to_vmem [thread:$0]  %s8, 16, %s97, [#allocation12]
    $region37: #{tpu_custom_call.1} parent=1 // pred_fallthru
      _
    // Predicated region
    $region38: #{tpu_custom_call.1} parent=1 // pred_check
      _
    $region39: #{tpu_custom_call.1} parent=1 // pred_check_branch
      %101 = sbr.rel (0) target = $region41
    $region40: #{tpu_custom_call.1} parent=1 // pred_region
      _
    $region41: #{tpu_custom_call.1} parent=1 // pred_fallthru
      _
    // Predicated region
    $region42: #{tpu_custom_call.1} parent=1 // pred_check
      _
    $region43: #{tpu_custom_call.1} parent=1 // pred_check_branch
      %103 = sbr.rel (0) target = $region45
    $region44: #{tpu_custom_call.1} parent=1 // pred_region
      _
    $region45: #{tpu_custom_call.1} parent=1 // pred_fallthru
      _
    // Predicated region
    $region46: #{tpu_custom_call.1} parent=1 // pred_check
      _
    $region47: #{tpu_custom_call.1} parent=1 // pred_check_branch
      %105 = sbr.rel (0) target = $region49
    $region48: #{tpu_custom_call.1} parent=1 // pred_region
      _
    $region49: #{tpu_custom_call.1} parent=1 // pred_fallthru
      _
    // Predicated region
    $region50: #{tpu_custom_call.1} parent=1 // pred_check
      _
    $region51: #{tpu_custom_call.1} parent=1 // pred_check_branch
      %107 = sbr.rel (0) target = $region53
    $region52: #{tpu_custom_call.1} parent=1 // pred_region
      _
    $region53: #{tpu_custom_call.1} parent=1 // pred_fallthru
      _
    // Predicated region
    $region54: #{tpu_custom_call.1} parent=1 // pred_check
      _
    $region55: #{tpu_custom_call.1} parent=1 // pred_check_branch
      %109 = sbr.rel (0) target = $region57
    $region56: #{tpu_custom_call.1} parent=1 // pred_region
      %110 = dma.done [#allocation4], 128
    $region57: #{tpu_custom_call.1} parent=1 // pred_fallthru
      _
    // Predicated region
    $region58: #{tpu_custom_call.1} parent=1 // pred_check
      _
    $region59: #{tpu_custom_call.1} parent=1 // pred_check_branch
      %112 = sbr.rel (0) target = $region61
    $region60: #{tpu_custom_call.1} parent=1 // pred_region
      %113 = dma.done [#allocation6], 128
    $region61: #{tpu_custom_call.1} parent=1 // pred_fallthru
      _
    // Predicated region
    $region62: #{tpu_custom_call.1} parent=1 // pred_check
      _
    $region63: #{tpu_custom_call.1} parent=1 // pred_check_branch
      %115 = sbr.rel (0) target = $region65
    $region64: #{tpu_custom_call.1} parent=1 // pred_region
      %116 = dma.done [#allocation6], 256
    $region65: #{tpu_custom_call.1} parent=1 // pred_fallthru
      _
    // Predicated region
    $region66: #{tpu_custom_call.1} parent=1 // pred_check
      _
    $region67: #{tpu_custom_call.1} parent=1 // pred_check_branch
      %118 = sbr.rel (0) target = $region69
    $region68: #{tpu_custom_call.1} parent=1 // pred_region
      %119 = dma.done [#allocation9], 256
    $region69: #{tpu_custom_call.1} parent=1 // pred_fallthru
      _
    // Predicated region
    $region70: #{tpu_custom_call.1} parent=1 // pred_check
      _
    $region71: #{tpu_custom_call.1} parent=1 // pred_check_branch
      %121 = sbr.rel (0) target = $region73
    $region72: #{tpu_custom_call.1} parent=1 // pred_region
      %122 = dma.done [#allocation9], 256
    $region73: #{tpu_custom_call.1} parent=1 // pred_fallthru
      _
    // Predicated region
    $region74: #{tpu_custom_call.1} parent=1 // pred_check
      _
    $region75: #{tpu_custom_call.1} parent=1 // pred_check_branch
      %124 = sbr.rel (0) target = $region77
    $region76: #{tpu_custom_call.1} parent=1 // pred_region
      %125 = dma.done [#allocation12], 16
    $region77: #{tpu_custom_call.1} parent=1 // pred_fallthru
      _
    %v127 = vld [vmem:[#allocation3] sm:$0xf]
    %v128 = vld [vmem:[#allocation3 + $0x4] sm:$0xf]
    %v129 = vld [vmem:[#allocation5] sm:$0xf]
    %v130 = vld [vmem:[#allocation5 + $0x4] sm:$0xf]
    %v131 = vld [vmem:[#allocation7] sm:$0xf]
    %v132 = vld [vmem:[#allocation7 + $0x4] sm:$0xf]
    %v133 = vld [vmem:[#allocation7 + $0x8] sm:$0xf]
    %v134 = vld [vmem:[#allocation7 + $0xc] sm:$0xf]
    %v135 = vld [vmem:[#allocation8] sm:$0xf]
    %v136 = vld [vmem:[#allocation8 + $0x4] sm:$0xf]
    %v137 = vld [vmem:[#allocation8 + $0x8] sm:$0xf]
    %v138 = vld [vmem:[#allocation8 + $0xc] sm:$0xf]
    %v141 = vunpack.c.l.b16 %v129
    %v142 = vunpack.c.l.b16 %v130
    %v143 = vpack.c.b16 %v142, %v141
    %v148 = vunpack.c.l.b16 %v135
    %v149 = vunpack.c.l.b16 %v136
    %v150 = vunpack.c.l.b16 %v137
    %v151 = vunpack.c.l.b16 %v138
    %v152 = vpack.c.b16 %v149, %v148
    %v153 = vpack.c.b16 %v151, %v150
    %vm156 = vcmask 261120
    %v158 = vsel %vm156, %v143, 0
    %160 = vmatprep.subr.bf16.mxu0 0
    %161 = vmatpush1.bf16.msra.mxu0 %v152
    %162 = vmatprep.subr.bf16.mxu0 0
    %163 = vmatpush1.bf16.msra.mxu0 %v153
    %164 = vmatprep.subr.bf16.mxu0 0
    %165 = vmatpush1.bf16.msra.mxu0 0
    %166 = vmatprep.subr.bf16.mxu0 0
    %167 = vmatpush1.bf16.msra.mxu0 0
    %168 = vmatprep.subr.bf16.mxu0 0
    %169 = vmatpush1.bf16.msra.mxu0 0
    %170 = vmatprep.subr.bf16.mxu0 0
    %171 = vmatpush1.bf16.msra.mxu0 0
    %172 = vmatprep.subr.bf16.mxu0 0
    %173 = vmatpush1.bf16.msra.mxu0 0
    %174 = vmatprep.subr.bf16.mxu0 0
    %175 = vmatpush1.bf16.msra.mxu0 0
    %176 = vmatprep.subr.bf16.mxu0 0
    %177 = vmatpush1.bf16.msra.mxu0 0
    %178 = vmatprep.subr.bf16.mxu0 0
    %179 = vmatpush1.bf16.msra.mxu0 0
    %180 = vmatprep.subr.bf16.mxu0 0
    %181 = vmatpush1.bf16.msra.mxu0 0
    %182 = vmatprep.subr.bf16.mxu0 0
    %183 = vmatpush1.bf16.msra.mxu0 0
    %184 = vmatprep.subr.bf16.mxu0 0
    %185 = vmatpush1.bf16.msra.mxu0 0
    %186 = vmatprep.subr.bf16.mxu0 0
    %187 = vmatpush1.bf16.msra.mxu0 0
    %188 = vmatprep.subr.bf16.mxu0 0
    %189 = vmatpush1.bf16.msra.mxu0 0
    %190 = vmatprep.subr.bf16.mxu0 0
    %191 = vmatpush1.bf16.msra.mxu0 0
    %192 = vmatprep.mubr.bf16.mxu0 0
    %193 = vmatmul.mubr.bf16.gmra.mrb[0].mxu0 %v158
    %v194 = vpop.f32.mrb[0].mxu0
    %v195 = vadd.f32 0.0, %v194
    %v196 = vpop.f32.mrb[0].mxu0
    %v197 = vpop.f32.mrb[0].mxu0
    %v198 = vadd.f32 0.0, %v197
    %v199 = vpop.f32.mrb[0].mxu0
    %200 = vdwg.mxu0
    %v203 = vunpack.c.l.b16 %v127
    %v204 = vunpack.c.l.b16 %v128
    %v205 = vpack.c.b16 %v204, %v203
    %v210 = vunpack.c.l.b16 %v131
    %v211 = vunpack.c.l.b16 %v132
    %v212 = vunpack.c.l.b16 %v133
    %v213 = vunpack.c.l.b16 %v134
    %v214 = vpack.c.b16 %v211, %v210
    %v215 = vpack.c.b16 %v213, %v212
    %v219 = vsel %vm156, %v205, 0
    %221 = vmatprep.subr.bf16.mxu0 0
    %222 = vmatpush1.bf16.msra.mxu0 %v214
    %223 = vmatprep.subr.bf16.mxu0 0
    %224 = vmatpush1.bf16.msra.mxu0 %v215
    %225 = vmatprep.subr.bf16.mxu0 0
    %226 = vmatpush1.bf16.msra.mxu0 0
    %227 = vmatprep.subr.bf16.mxu0 0
    %228 = vmatpush1.bf16.msra.mxu0 0
    %229 = vmatprep.subr.bf16.mxu0 0
    %230 = vmatpush1.bf16.msra.mxu0 0
    %231 = vmatprep.subr.bf16.mxu0 0
    %232 = vmatpush1.bf16.msra.mxu0 0
    %233 = vmatprep.subr.bf16.mxu0 0
    %234 = vmatpush1.bf16.msra.mxu0 0
    %235 = vmatprep.subr.bf16.mxu0 0
    %236 = vmatpush1.bf16.msra.mxu0 0
    %237 = vmatprep.subr.bf16.mxu0 0
    %238 = vmatpush1.bf16.msra.mxu0 0
    %239 = vmatprep.subr.bf16.mxu0 0
    %240 = vmatpush1.bf16.msra.mxu0 0
    %241 = vmatprep.subr.bf16.mxu0 0
    %242 = vmatpush1.bf16.msra.mxu0 0
    %243 = vmatprep.subr.bf16.mxu0 0
    %244 = vmatpush1.bf16.msra.mxu0 0
    %245 = vmatprep.subr.bf16.mxu0 0
    %246 = vmatpush1.bf16.msra.mxu0 0
    %247 = vmatprep.subr.bf16.mxu0 0
    %248 = vmatpush1.bf16.msra.mxu0 0
    %249 = vmatprep.subr.bf16.mxu0 0
    %250 = vmatpush1.bf16.msra.mxu0 0
    %251 = vmatprep.subr.bf16.mxu0 0
    %252 = vmatpush1.bf16.msra.mxu0 0
    %253 = vmatprep.mubr.bf16.mxu0 0
    %254 = vmatmul.mubr.bf16.gmra.mrb[0].mxu0 %v219
    %v255 = vpop.f32.mrb[0].mxu0
    %v256 = vadd.f32 %v195, %v255
    %v257 = vpop.f32.mrb[0].mxu0
    %v258 = vpop.f32.mrb[0].mxu0
    %v259 = vadd.f32 %v198, %v258
    %v260 = vpop.f32.mrb[0].mxu0
    %261 = vdwg.mxu0
    %v262 = vld [vmem:[%s4] sm:$0x1]
    %v264 = vlaneseq
    %v265 = vshrl.u32 %v264, 7
    %v266 = vsub.s32 0, %v265
    %v267 = vrot.slane %v262, %v266
    %v269 = vadd.f32 %v256, %v267
    %v270 = vadd.f32 %v259, %v267
    %v271 = vmax.f32 %v269, 0.0
    %v272 = vmax.f32 %v270, 0.0
    %v273 = vpack.c.bf16 %v272, %v271
    %v274 = vld [vmem:[%s5] sm:$0xf]
    %v275 = vld [vmem:[%s5 + $0x4] sm:$0xf]
    %v276 = vld [vmem:[%s5 + $0x8] sm:$0xf]
    %v277 = vld [vmem:[%s5 + $0xc] sm:$0xf]
    %v278 = vld [vmem:[%s6] sm:$0x1]
    %v280 = vlaneseq
    %v281 = vshrl.u32 %v280, 7
    %v282 = vsub.s32 0, %v281
    %v283 = vrot.slane %v278, %v282
    %v289 = vunpack.c.l.b16 %v274
    %v290 = vunpack.c.l.b16 %v275
    %v291 = vunpack.c.l.b16 %v276
    %v292 = vunpack.c.l.b16 %v277
    %v293 = vpack.c.b16 %v290, %v289
    %v294 = vpack.c.b16 %v292, %v291
    %v298 = vsel %vm156, %v273, 0
    %300 = vmatprep.subr.bf16.mxu0 0
    %301 = vmatpush1.bf16.msra.mxu0 %v293
    %302 = vmatprep.subr.bf16.mxu0 0
    %303 = vmatpush1.bf16.msra.mxu0 %v294
    %304 = vmatprep.subr.bf16.mxu0 0
    %305 = vmatpush1.bf16.msra.mxu0 0
    %306 = vmatprep.subr.bf16.mxu0 0
    %307 = vmatpush1.bf16.msra.mxu0 0
    %308 = vmatprep.subr.bf16.mxu0 0
    %309 = vmatpush1.bf16.msra.mxu0 0
    %310 = vmatprep.subr.bf16.mxu0 0
    %311 = vmatpush1.bf16.msra.mxu0 0
    %312 = vmatprep.subr.bf16.mxu0 0
    %313 = vmatpush1.bf16.msra.mxu0 0
    %314 = vmatprep.subr.bf16.mxu0 0
    %315 = vmatpush1.bf16.msra.mxu0 0
    %316 = vmatprep.subr.bf16.mxu0 0
    %317 = vmatpush1.bf16.msra.mxu0 0
    %318 = vmatprep.subr.bf16.mxu0 0
    %319 = vmatpush1.bf16.msra.mxu0 0
    %320 = vmatprep.subr.bf16.mxu0 0
    %321 = vmatpush1.bf16.msra.mxu0 0
    %322 = vmatprep.subr.bf16.mxu0 0
    %323 = vmatpush1.bf16.msra.mxu0 0
    %324 = vmatprep.subr.bf16.mxu0 0
    %325 = vmatpush1.bf16.msra.mxu0 0
    %326 = vmatprep.subr.bf16.mxu0 0
    %327 = vmatpush1.bf16.msra.mxu0 0
    %328 = vmatprep.subr.bf16.mxu0 0
    %329 = vmatpush1.bf16.msra.mxu0 0
    %330 = vmatprep.subr.bf16.mxu0 0
    %331 = vmatpush1.bf16.msra.mxu0 0
    %332 = vmatprep.mubr.bf16.mxu0 0
    %333 = vmatmul.mubr.bf16.gmra.mrb[0].mxu0 %v298
    %v334 = vpop.f32.mrb[0].mxu0
    %v335 = vadd.f32 %v283, %v334
    %v336 = vpop.f32.mrb[0].mxu0
    %v337 = vpop.f32.mrb[0].mxu0
    %v338 = vadd.f32 %v283, %v337
    %v339 = vpop.f32.mrb[0].mxu0
    %340 = vdwg.mxu0
    %v341 = vmax.f32 %v335, 0.0
    %v342 = vmax.f32 %v338, 0.0
    %v343 = vpack.c.bf16 %v342, %v341
    %v344 = vld [vmem:[#allocation10] sm:$0xf]
    %v345 = vld [vmem:[#allocation10 + $0x4] sm:$0xf]
    %v346 = vld [vmem:[#allocation10 + $0x8] sm:$0xf]
    %v347 = vld [vmem:[#allocation10 + $0xc] sm:$0xf]
    %v348 = vld [vmem:[#allocation11] sm:$0x1]
    %v350 = vlaneseq
    %v351 = vshrl.u32 %v350, 7
    %v352 = vsub.s32 0, %v351
    %v353 = vrot.slane %v348, %v352
    %v359 = vunpack.c.l.b16 %v344
    %v360 = vunpack.c.l.b16 %v345
    %v361 = vunpack.c.l.b16 %v346
    %v362 = vunpack.c.l.b16 %v347
    %v363 = vpack.c.b16 %v360, %v359
    %v364 = vpack.c.b16 %v362, %v361
    %v368 = vsel %vm156, %v343, 0
    %370 = vmatprep.subr.bf16.mxu0 0
    %371 = vmatpush1.bf16.msra.mxu0 %v363
    %372 = vmatprep.subr.bf16.mxu0 0
    %373 = vmatpush1.bf16.msra.mxu0 %v364
    %374 = vmatprep.subr.bf16.mxu0 0
    %375 = vmatpush1.bf16.msra.mxu0 0
    %376 = vmatprep.subr.bf16.mxu0 0
    %377 = vmatpush1.bf16.msra.mxu0 0
    %378 = vmatprep.subr.bf16.mxu0 0
    %379 = vmatpush1.bf16.msra.mxu0 0
    %380 = vmatprep.subr.bf16.mxu0 0
    %381 = vmatpush1.bf16.msra.mxu0 0
    %382 = vmatprep.subr.bf16.mxu0 0
    %383 = vmatpush1.bf16.msra.mxu0 0
    %384 = vmatprep.subr.bf16.mxu0 0
    %385 = vmatpush1.bf16.msra.mxu0 0
    %386 = vmatprep.subr.bf16.mxu0 0
    %387 = vmatpush1.bf16.msra.mxu0 0
    %388 = vmatprep.subr.bf16.mxu0 0
    %389 = vmatpush1.bf16.msra.mxu0 0
    %390 = vmatprep.subr.bf16.mxu0 0
    %391 = vmatpush1.bf16.msra.mxu0 0
    %392 = vmatprep.subr.bf16.mxu0 0
    %393 = vmatpush1.bf16.msra.mxu0 0
    %394 = vmatprep.subr.bf16.mxu0 0
    %395 = vmatpush1.bf16.msra.mxu0 0
    %396 = vmatprep.subr.bf16.mxu0 0
    %397 = vmatpush1.bf16.msra.mxu0 0
    %398 = vmatprep.subr.bf16.mxu0 0
    %399 = vmatpush1.bf16.msra.mxu0 0
    %400 = vmatprep.subr.bf16.mxu0 0
    %401 = vmatpush1.bf16.msra.mxu0 0
    %402 = vmatprep.mubr.bf16.mxu0 0
    %403 = vmatmul.mubr.bf16.gmra.mrb[0].mxu0 %v368
    %v404 = vpop.f32.mrb[0].mxu0
    %v405 = vadd.f32 %v353, %v404
    %v406 = vpop.f32.mrb[0].mxu0
    %v407 = vpop.f32.mrb[0].mxu0
    %v408 = vadd.f32 %v353, %v407
    %v409 = vpop.f32.mrb[0].mxu0
    %410 = vdwg.mxu0
    %v411 = vmax.f32 %v405, 0.0
    %v412 = vmax.f32 %v408, 0.0
    %v413 = vpack.c.bf16 %v412, %v411
    %v414 = vld [vmem:[%s9] sm:$0xf]
    %v415 = vld [vmem:[%s9 + $0x4] sm:$0xf]
    %v416 = vld [vmem:[%s9 + $0x8] sm:$0xf]
    %v417 = vld [vmem:[%s9 + $0xc] sm:$0xf]
    %v418 = vld [vmem:[%s10] sm:$0x1]
    %v420 = vlaneseq
    %v421 = vshrl.u32 %v420, 7
    %v422 = vsub.s32 0, %v421
    %v423 = vrot.slane %v418, %v422
    %v429 = vunpack.c.l.b16 %v414
    %v430 = vunpack.c.l.b16 %v415
    %v431 = vunpack.c.l.b16 %v416
    %v432 = vunpack.c.l.b16 %v417
    %v433 = vpack.c.b16 %v430, %v429
    %v434 = vpack.c.b16 %v432, %v431
    %v438 = vsel %vm156, %v413, 0
    %440 = vmatprep.subr.bf16.mxu0 0
    %441 = vmatpush1.bf16.msra.mxu0 %v433
    %442 = vmatprep.subr.bf16.mxu0 0
    %443 = vmatpush1.bf16.msra.mxu0 %v434
    %444 = vmatprep.subr.bf16.mxu0 0
    %445 = vmatpush1.bf16.msra.mxu0 0
    %446 = vmatprep.subr.bf16.mxu0 0
    %447 = vmatpush1.bf16.msra.mxu0 0
    %448 = vmatprep.subr.bf16.mxu0 0
    %449 = vmatpush1.bf16.msra.mxu0 0
    %450 = vmatprep.subr.bf16.mxu0 0
    %451 = vmatpush1.bf16.msra.mxu0 0
    %452 = vmatprep.subr.bf16.mxu0 0
    %453 = vmatpush1.bf16.msra.mxu0 0
    %454 = vmatprep.subr.bf16.mxu0 0
    %455 = vmatpush1.bf16.msra.mxu0 0
    %456 = vmatprep.subr.bf16.mxu0 0
    %457 = vmatpush1.bf16.msra.mxu0 0
    %458 = vmatprep.subr.bf16.mxu0 0
    %459 = vmatpush1.bf16.msra.mxu0 0
    %460 = vmatprep.subr.bf16.mxu0 0
    %461 = vmatpush1.bf16.msra.mxu0 0
    %462 = vmatprep.subr.bf16.mxu0 0
    %463 = vmatpush1.bf16.msra.mxu0 0
    %464 = vmatprep.subr.bf16.mxu0 0
    %465 = vmatpush1.bf16.msra.mxu0 0
    %466 = vmatprep.subr.bf16.mxu0 0
    %467 = vmatpush1.bf16.msra.mxu0 0
    %468 = vmatprep.subr.bf16.mxu0 0
    %469 = vmatpush1.bf16.msra.mxu0 0
    %470 = vmatprep.subr.bf16.mxu0 0
    %471 = vmatpush1.bf16.msra.mxu0 0
    %472 = vmatprep.mubr.bf16.mxu0 0
    %473 = vmatmul.mubr.bf16.gmra.mrb[0].mxu0 %v438
    %v474 = vpop.f32.mrb[0].mxu0
    %v475 = vadd.f32 %v423, %v474
    %v476 = vpop.f32.mrb[0].mxu0
    %v477 = vpop.f32.mrb[0].mxu0
    %v478 = vadd.f32 %v423, %v477
    %v479 = vpop.f32.mrb[0].mxu0
    %480 = vdwg.mxu0
    %v481 = vmax.f32 %v475, 0.0
    %v482 = vmax.f32 %v478, 0.0
    %v483 = vld [vmem:[%s11] sm:$0x1]
    %v484 = vunpack.c.l.bf16 %v483
    %v485 = vlaneseq
    %v486 = vshrl.u32 %v485, 7
    %v487 = vsub.s32 0, %v486
    %v488 = vrot.slane %v484, %v487
    %v489 = vmul.f32 %v481, %v488
    %v490 = vmul.f32 %v482, %v488
    %v491 = vsel %vm156, %v489, 0.0
    %492 = vadd.xlane.f32.xlu0 %v491
    %v493 = vpop.xlane.xlu0 %492
    %v494 = vsel %vm156, %v490, 0.0
    %495 = vadd.xlane.f32.xlu0 %v494
    %v496 = vpop.xlane.xlu0 %495
    %v497 = vld [vmem:[#allocation2] sm:$0x1]
    %v499 = vlaneseq
    %v500 = vshrl.u32 %v499, 7
    %v501 = vsub.s32 0, %v500
    %v502 = vrot.slane %v497, %v501
    %v504 = vadd.f32 %v493, %v502
    %v505 = vadd.f32 %v496, %v502
    %vm506 = vcmask 7168
    %507 = vst.msk [vmem:[%s13] sm:$0xff] %vm506, %v504
    %508 = vst.msk [vmem:[%s13 + $0x8] sm:$0xff] %vm506, %v505
    // Predicated region
    $region78: #{tpu_custom_call.1} parent=1 // pred_check
      _
    $region79: #{tpu_custom_call.1} parent=1 // pred_check_branch
      %510 = sbr.rel (0) target = $region81
    $region80: #{tpu_custom_call.1} parent=1 // pred_region
      _
    $region81: #{tpu_custom_call.1} parent=1 // pred_fallthru
      _
    // Predicated region
    $region82: #{tpu_custom_call.1} parent=1 // pred_check
      _
    $region83: #{tpu_custom_call.1} parent=1 // pred_check_branch
      %512 = sbr.rel (0) target = $region85
    $region84: #{tpu_custom_call.1} parent=1 // pred_region
      _
    $region85: #{tpu_custom_call.1} parent=1 // pred_fallthru
      _
    %513 = vsyncpa [#allocation4], 1
    %514 = vsyncpa [#allocation6], 1
    %515 = vsyncpa [#allocation9], 1
    %516 = vsyncpa [#allocation12], 1

// kernel: tpu_custom_call.1
$region0: #{tpu_custom_call.1}
  #allocation0 [shape = 'u32[]', space=smem, size = 0x4, offset = 0x4, fixed_abs, tag = 'smem constant byte address 0x4 - core index']
  #allocation1 [shape = 'u32[144,128]{1,0:T(1,128)}', space=vmem, size = 0x12000, scoped, tag = 'internal scratch']
  #allocation2 [shape = 'f32[1,1]{1,0:T(1,128)S(1)}', space=vmem, size = 0x200, scoped, tag = 'scoped memory for tpu_custom_call.1']
  %s0 = inlined_call_operand.hbm [shape: bf16[16,32], index: 0, kind: input, shape index: {}]
  %s1 = inlined_call_operand.hbm [shape: bf16[16,32], index: 1, kind: input, shape index: {}]
  %s2 = inlined_call_operand.hbm [shape: bf16[32,32], index: 2, kind: input, shape index: {}]
  %s3 = inlined_call_operand.hbm [shape: bf16[32,32], index: 3, kind: input, shape index: {}]
  %s4 = inlined_call_operand.vmem [shape: f32[1,32], index: 4, kind: input, shape index: {}]
  %s5 = inlined_call_operand.vmem [shape: bf16[32,32], index: 5, kind: input, shape index: {}]
  %s6 = inlined_call_operand.vmem [shape: f32[1,32], index: 6, kind: input, shape index: {}]
  %s7 = inlined_call_operand.hbm [shape: bf16[32,32], index: 7, kind: input, shape index: {}]
  %s8 = inlined_call_operand.hbm [shape: f32[1,32], index: 8, kind: input, shape index: {}]
  %s9 = inlined_call_operand.vmem [shape: bf16[32,32], index: 9, kind: input, shape index: {}]
  %s10 = inlined_call_operand.vmem [shape: f32[1,32], index: 10, kind: input, shape index: {}]
  %s11 = inlined_call_operand.vmem [shape: bf16[1,32], index: 11, kind: input, shape index: {}]
  %s12 = inlined_call_operand.<no memory space> [shape: f32[1,1], index: 12, kind: input, shape index: {}]
  %s13 = inlined_call_operand.vmem [shape: f32[16,1], index: 13, kind: output, shape index: {}]
  %s14 = sld [smem:[#allocation0]]
  $region86: #{tpu_custom_call.1} parent=0
    _
  %s16 = ssub.s32 1, %s14
  %s17 = scalar_select 0, %s16, %s14
  %v18 = vstv %s12
  %19 = vst [vmem:[#allocation2] sm:$0x1] %v18
  $region1: #{tpu_custom_call.1} parent=0
    #allocation3 [shape = 'u8[4096]{0}', space=vmem, size = 0x1000, scoped, tag = 'input window, operand 0, single buffered']
    #allocation4 [shape = 's32[1]{0}', space=sflag, size = 0x4, scoped, tag = 'scoped memory for tpu_custom_call.1']
    #allocation5 [shape = 'u8[4096]{0}', space=vmem, size = 0x1000, scoped, tag = 'input window, operand 1, single buffered']
    #allocation6 [shape = 's32[1]{0}', space=sflag, size = 0x4, scoped, tag = 'scoped memory for tpu_custom_call.1']
    #allocation7 [shape = 'u8[8192]{0}', space=vmem, size = 0x2000, scoped, tag = 'input window, operand 2, single buffered']
    #allocation8 [shape = 'u8[8192]{0}', space=vmem, size = 0x2000, scoped, tag = 'input window, operand 3, single buffered']
    #allocation9 [shape = 's32[1]{0}', space=sflag, size = 0x4, scoped, tag = 'scoped memory for tpu_custom_call.1']
    #allocation10 [shape = 'u8[8192]{0}', space=vmem, size = 0x2000, scoped, tag = 'input window, operand 7, single buffered']
    #allocation11 [shape = 'u8[512]{0}', space=vmem, size = 0x400, scoped, tag = 'input window, operand 8, single buffered']
    #allocation12 [shape = 's32[1]{0}', space=sflag, size = 0x4, scoped, tag = 'scoped memory for tpu_custom_call.1']
    %20 = vsyncpa [#allocation4], 0
    %21 = vsyncpa [#allocation6], 0
    %22 = vsyncpa [#allocation9], 0
    %23 = vsyncpa [#allocation12], 0
    // Predicated region
    $region2: #{tpu_custom_call.1} parent=1 // pred_check
      _
    $region3: #{tpu_custom_call.1} parent=1 // pred_check_branch
      %25 = sbr.rel (0) target = $region5
    $region4: #{tpu_custom_call.1} parent=1 // pred_region
      %s27 = ssub.s32 128, 128
      %28 = vsyncadd [#allocation4], %s27
      %s29 = sshll.u32 [#allocation3], 4
      %s30 = int_to_ptr.vmem [resolvable:$true] %s29
      %35 = dma.hbm_to_vmem [thread:$0]  %s0, 128, %s30, [#allocation4], 64, 64, 4
    $region5: #{tpu_custom_call.1} parent=1 // pred_fallthru
      _
    // Predicated region
    $region6: #{tpu_custom_call.1} parent=1 // pred_check
      _
    $region7: #{tpu_custom_call.1} parent=1 // pred_check_branch
      %37 = sbr.rel (0) target = $region9
    $region8: #{tpu_custom_call.1} parent=1 // pred_region
      %s39 = ssub.s32 128, 128
      %40 = vsyncadd [#allocation6], %s39
      %s41 = sshll.u32 [#allocation5], 4
      %s42 = int_to_ptr.vmem [resolvable:$true] %s41
      %47 = dma.hbm_to_vmem [thread:$0]  %s1, 128, %s42, [#allocation6], 64, 64, 4
    $region9: #{tpu_custom_call.1} parent=1 // pred_fallthru
      _
    // Predicated region
    $region10: #{tpu_custom_call.1} parent=1 // pred_check
      _
    $region11: #{tpu_custom_call.1} parent=1 // pred_check_branch
      %49 = sbr.rel (0) target = $region13
    $region12: #{tpu_custom_call.1} parent=1 // pred_region
      %s51 = ssub.s32 256, 256
      %52 = vsyncadd [#allocation6], %s51
      %s53 = sshll.u32 [#allocation7], 4
      %s54 = int_to_ptr.vmem [resolvable:$true] %s53
      %59 = dma.hbm_to_vmem [thread:$0]  %s2, 256, %s54, [#allocation6], 64, 64, 4
    $region13: #{tpu_custom_call.1} parent=1 // pred_fallthru
      _
    // Predicated region
    $region14: #{tpu_custom_call.1} parent=1 // pred_check
      _
    $region15: #{tpu_custom_call.1} parent=1 // pred_check_branch
      %61 = sbr.rel (0) target = $region17
    $region16: #{tpu_custom_call.1} parent=1 // pred_region
      %s63 = ssub.s32 256, 256
      %64 = vsyncadd [#allocation9], %s63
      %s65 = sshll.u32 [#allocation8], 4
      %s66 = int_to_ptr.vmem [resolvable:$true] %s65
      %71 = dma.hbm_to_vmem [thread:$0]  %s3, 256, %s66, [#allocation9], 64, 64, 4
    $region17: #{tpu_custom_call.1} parent=1 // pred_fallthru
      _
    // Predicated region
    $region18: #{tpu_custom_call.1} parent=1 // pred_check
      _
    $region19: #{tpu_custom_call.1} parent=1 // pred_check_branch
      %73 = sbr.rel (0) target = $region21
    $region20: #{tpu_custom_call.1} parent=1 // pred_region
      _
    $region21: #{tpu_custom_call.1} parent=1 // pred_fallthru
      _
    // Predicated region
    $region22: #{tpu_custom_call.1} parent=1 // pred_check
      _
    $region23: #{tpu_custom_call.1} parent=1 // pred_check_branch
      %75 = sbr.rel (0) target = $region25
    $region24: #{tpu_custom_call.1} parent=1 // pred_region
      _
    $region25: #{tpu_custom_call.1} parent=1 // pred_fallthru
      _
    // Predicated region
    $region26: #{tpu_custom_call.1} parent=1 // pred_check
      _
    $region27: #{tpu_custom_call.1} parent=1 // pred_check_branch
      %77 = sbr.rel (0) target = $region29
    $region28: #{tpu_custom_call.1} parent=1 // pred_region
      _
    $region29: #{tpu_custom_call.1} parent=1 // pred_fallthru
      _
    // Predicated region
    $region30: #{tpu_custom_call.1} parent=1 // pred_check
      _
    $region31: #{tpu_custom_call.1} parent=1 // pred_check_branch
      %79 = sbr.rel (0) target = $region33
    $region32: #{tpu_custom_call.1} parent=1 // pred_region
      %s81 = ssub.s32 256, 256
      %82 = vsyncadd [#allocation9], %s81
      %s83 = sshll.u32 [#allocation10], 4
      %s84 = int_to_ptr.vmem [resolvable:$true] %s83
      %89 = dma.hbm_to_vmem [thread:$0]  %s7, 256, %s84, [#allocation9], 64, 64, 4
    $region33: #{tpu_custom_call.1} parent=1 // pred_fallthru
      _
    // Predicated region
    $region34: #{tpu_custom_call.1} parent=1 // pred_check
      _
    $region35: #{tpu_custom_call.1} parent=1 // pred_check_branch
      %91 = sbr.rel (0) target = $region37
    $region36: #{tpu_custom_call.1} parent=1 // pred_region
      %s93 = ssub.s32 16, 16
      %94 = vsyncadd [#allocation12], %s93
      %s96 = sshll.u32 [#allocation11], 4
      %s97 = int_to_ptr.vmem [resolvable:$true] %s96
      %99 = dma.hbm_to_vmem [thread:$0]  %s8, 16, %s97, [#allocation12]
    $region37: #{tpu_custom_call.1} parent=1 // pred_fallthru
      _
    // Predicated region
    $region38: #{tpu_custom_call.1} parent=1 // pred_check
      _
    $region39: #{tpu_custom_call.1} parent=1 // pred_check_branch
      %101 = sbr.rel (0) target = $region41
    $region40: #{tpu_custom_call.1} parent=1 // pred_region
      _
    $region41: #{tpu_custom_call.1} parent=1 // pred_fallthru
      _
    // Predicated region
    $region42: #{tpu_custom_call.1} parent=1 // pred_check
      _
    $region43: #{tpu_custom_call.1} parent=1 // pred_check_branch
      %103 = sbr.rel (0) target = $region45
    $region44: #{tpu_custom_call.1} parent=1 // pred_region
      _
    $region45: #{tpu_custom_call.1} parent=1 // pred_fallthru
      _
    // Predicated region
    $region46: #{tpu_custom_call.1} parent=1 // pred_check
      _
    $region47: #{tpu_custom_call.1} parent=1 // pred_check_branch
      %105 = sbr.rel (0) target = $region49
    $region48: #{tpu_custom_call.1} parent=1 // pred_region
      _
    $region49: #{tpu_custom_call.1} parent=1 // pred_fallthru
      _
    // Predicated region
    $region50: #{tpu_custom_call.1} parent=1 // pred_check
      _
    $region51: #{tpu_custom_call.1} parent=1 // pred_check_branch
      %107 = sbr.rel (0) target = $region53
    $region52: #{tpu_custom_call.1} parent=1 // pred_region
      _
    $region53: #{tpu_custom_call.1} parent=1 // pred_fallthru
      _
    // Predicated region
    $region54: #{tpu_custom_call.1} parent=1 // pred_check
      _
    $region55: #{tpu_custom_call.1} parent=1 // pred_check_branch
      %109 = sbr.rel (0) target = $region57
    $region56: #{tpu_custom_call.1} parent=1 // pred_region
      %110 = dma.done [#allocation4], 128
    $region57: #{tpu_custom_call.1} parent=1 // pred_fallthru
      _
    // Predicated region
    $region58: #{tpu_custom_call.1} parent=1 // pred_check
      _
    $region59: #{tpu_custom_call.1} parent=1 // pred_check_branch
      %112 = sbr.rel (0) target = $region61
    $region60: #{tpu_custom_call.1} parent=1 // pred_region
      %113 = dma.done [#allocation6], 128
    $region61: #{tpu_custom_call.1} parent=1 // pred_fallthru
      _
    // Predicated region
    $region62: #{tpu_custom_call.1} parent=1 // pred_check
      _
    $region63: #{tpu_custom_call.1} parent=1 // pred_check_branch
      %115 = sbr.rel (0) target = $region65
    $region64: #{tpu_custom_call.1} parent=1 // pred_region
      %116 = dma.done [#allocation6], 256
    $region65: #{tpu_custom_call.1} parent=1 // pred_fallthru
      _
    // Predicated region
    $region66: #{tpu_custom_call.1} parent=1 // pred_check
      _
    $region67: #{tpu_custom_call.1} parent=1 // pred_check_branch
      %118 = sbr.rel (0) target = $region69
    $region68: #{tpu_custom_call.1} parent=1 // pred_region
      %119 = dma.done [#allocation9], 256
    $region69: #{tpu_custom_call.1} parent=1 // pred_fallthru
      _
    // Predicated region
    $region70: #{tpu_custom_call.1} parent=1 // pred_check
      _
    $region71: #{tpu_custom_call.1} parent=1 // pred_check_branch
      %121 = sbr.rel (0) target = $region73
    $region72: #{tpu_custom_call.1} parent=1 // pred_region
      %122 = dma.done [#allocation9], 256
    $region73: #{tpu_custom_call.1} parent=1 // pred_fallthru
      _
    // Predicated region
    $region74: #{tpu_custom_call.1} parent=1 // pred_check
      _
    $region75: #{tpu_custom_call.1} parent=1 // pred_check_branch
      %124 = sbr.rel (0) target = $region77
    $region76: #{tpu_custom_call.1} parent=1 // pred_region
      %125 = dma.done [#allocation12], 16
    $region77: #{tpu_custom_call.1} parent=1 // pred_fallthru
      _
    %v127 = vld [vmem:[#allocation3] sm:$0xf]
    %v128 = vld [vmem:[#allocation3 + $0x4] sm:$0xf]
    %v129 = vld [vmem:[#allocation5] sm:$0xf]
    %v130 = vld [vmem:[#allocation5 + $0x4] sm:$0xf]
    %v131 = vld [vmem:[#allocation7] sm:$0xf]
    %v132 = vld [vmem:[#allocation7 + $0x4] sm:$0xf]
    %v133 = vld [vmem:[#allocation7 + $0x8] sm:$0xf]
    %v134 = vld [vmem:[#allocation7 + $0xc] sm:$0xf]
    %v135 = vld [vmem:[#allocation8] sm:$0xf]
    %v136 = vld [vmem:[#allocation8 + $0x4] sm:$0xf]
    %v137 = vld [vmem:[#allocation8 + $0x8] sm:$0xf]
    %v138 = vld [vmem:[#allocation8 + $0xc] sm:$0xf]
    %v141 = vunpack.c.l.b16 %v129
    %v142 = vunpack.c.l.b16 %v130
    %v143 = vpack.c.b16 %v142, %v141
    %v148 = vunpack.c.l.b16 %v135
    %v149 = vunpack.c.l.b16 %v136
    %v150 = vunpack.c.l.b16 %v137
    %v151 = vunpack.c.l.b16 %v138
    %v152 = vpack.c.b16 %v149, %v148
    %v153 = vpack.c.b16 %v151, %v150
    %vm156 = vcmask 261120
    %v158 = vsel %vm156, %v143, 0
    %160 = vmatprep.subr.bf16.mxu0 0
    %161 = vmatpush1.bf16.msra.mxu0 %v152
    %162 = vmatprep.subr.bf16.mxu0 0
    %163 = vmatpush1.bf16.msra.mxu0 %v153
    %164 = vmatprep.subr.bf16.mxu0 0
    %165 = vmatpush1.bf16.msra.mxu0 0
    %166 = vmatprep.subr.bf16.mxu0 0
    %167 = vmatpush1.bf16.msra.mxu0 0
    %168 = vmatprep.subr.bf16.mxu0 0
    %169 = vmatpush1.bf16.msra.mxu0 0
    %170 = vmatprep.subr.bf16.mxu0 0
    %171 = vmatpush1.bf16.msra.mxu0 0
    %172 = vmatprep.subr.bf16.mxu0 0
    %173 = vmatpush1.bf16.msra.mxu0 0
    %174 = vmatprep.subr.bf16.mxu0 0
    %175 = vmatpush1.bf16.msra.mxu0 0
    %176 = vmatprep.subr.bf16.mxu0 0
    %177 = vmatpush1.bf16.msra.mxu0 0
    %178 = vmatprep.subr.bf16.mxu0 0
    %179 = vmatpush1.bf16.msra.mxu0 0
    %180 = vmatprep.subr.bf16.mxu0 0
    %181 = vmatpush1.bf16.msra.mxu0 0
    %182 = vmatprep.subr.bf16.mxu0 0
    %183 = vmatpush1.bf16.msra.mxu0 0
    %184 = vmatprep.subr.bf16.mxu0 0
    %185 = vmatpush1.bf16.msra.mxu0 0
    %186 = vmatprep.subr.bf16.mxu0 0
    %187 = vmatpush1.bf16.msra.mxu0 0
    %188 = vmatprep.subr.bf16.mxu0 0
    %189 = vmatpush1.bf16.msra.mxu0 0
    %190 = vmatprep.subr.bf16.mxu0 0
    %191 = vmatpush1.bf16.msra.mxu0 0
    %192 = vmatprep.mubr.bf16.mxu0 0
    %193 = vmatmul.mubr.bf16.gmra.mrb[0].mxu0 %v158
    %v194 = vpop.f32.mrb[0].mxu0
    %v195 = vadd.f32 0.0, %v194
    %v196 = vpop.f32.mrb[0].mxu0
    %v197 = vpop.f32.mrb[0].mxu0
    %v198 = vadd.f32 0.0, %v197
    %v199 = vpop.f32.mrb[0].mxu0
    %200 = vdwg.mxu0
    %v203 = vunpack.c.l.b16 %v127
    %v204 = vunpack.c.l.b16 %v128
    %v205 = vpack.c.b16 %v204, %v203
    %v210 = vunpack.c.l.b16 %v131
    %v211 = vunpack.c.l.b16 %v132
    %v212 = vunpack.c.l.b16 %v133
    %v213 = vunpack.c.l.b16 %v134
    %v214 = vpack.c.b16 %v211, %v210
    %v215 = vpack.c.b16 %v213, %v212
    %v219 = vsel %vm156, %v205, 0
    %221 = vmatprep.subr.bf16.mxu0 0
    %222 = vmatpush1.bf16.msra.mxu0 %v214
    %223 = vmatprep.subr.bf16.mxu0 0
    %224 = vmatpush1.bf16.msra.mxu0 %v215
    %225 = vmatprep.subr.bf16.mxu0 0
    %226 = vmatpush1.bf16.msra.mxu0 0
    %227 = vmatprep.subr.bf16.mxu0 0
    %228 = vmatpush1.bf16.msra.mxu0 0
    %229 = vmatprep.subr.bf16.mxu0 0
    %230 = vmatpush1.bf16.msra.mxu0 0
    %231 = vmatprep.subr.bf16.mxu0 0
    %232 = vmatpush1.bf16.msra.mxu0 0
    %233 = vmatprep.subr.bf16.mxu0 0
    %234 = vmatpush1.bf16.msra.mxu0 0
    %235 = vmatprep.subr.bf16.mxu0 0
    %236 = vmatpush1.bf16.msra.mxu0 0
    %237 = vmatprep.subr.bf16.mxu0 0
    %238 = vmatpush1.bf16.msra.mxu0 0
    %239 = vmatprep.subr.bf16.mxu0 0
    %240 = vmatpush1.bf16.msra.mxu0 0
    %241 = vmatprep.subr.bf16.mxu0 0
    %242 = vmatpush1.bf16.msra.mxu0 0
    %243 = vmatprep.subr.bf16.mxu0 0
    %244 = vmatpush1.bf16.msra.mxu0 0
    %245 = vmatprep.subr.bf16.mxu0 0
    %246 = vmatpush1.bf16.msra.mxu0 0
    %247 = vmatprep.subr.bf16.mxu0 0
    %248 = vmatpush1.bf16.msra.mxu0 0
    %249 = vmatprep.subr.bf16.mxu0 0
    %250 = vmatpush1.bf16.msra.mxu0 0
    %251 = vmatprep.subr.bf16.mxu0 0
    %252 = vmatpush1.bf16.msra.mxu0 0
    %253 = vmatprep.mubr.bf16.mxu0 0
    %254 = vmatmul.mubr.bf16.gmra.mrb[0].mxu0 %v219
    %v255 = vpop.f32.mrb[0].mxu0
    %v256 = vadd.f32 %v195, %v255
    %v257 = vpop.f32.mrb[0].mxu0
    %v258 = vpop.f32.mrb[0].mxu0
    %v259 = vadd.f32 %v198, %v258
    %v260 = vpop.f32.mrb[0].mxu0
    %261 = vdwg.mxu0
    %v262 = vld [vmem:[%s4] sm:$0x1]
    %v264 = vlaneseq
    %v265 = vshrl.u32 %v264, 7
    %v266 = vsub.s32 0, %v265
    %v267 = vrot.slane %v262, %v266
    %v269 = vadd.f32 %v256, %v267
    %v270 = vadd.f32 %v259, %v267
    %v271 = vmax.f32 %v269, 0.0
    %v272 = vmax.f32 %v270, 0.0
    %v273 = vpack.c.bf16 %v272, %v271
    %v274 = vld [vmem:[%s5] sm:$0xf]
    %v275 = vld [vmem:[%s5 + $0x4] sm:$0xf]
    %v276 = vld [vmem:[%s5 + $0x8] sm:$0xf]
    %v277 = vld [vmem:[%s5 + $0xc] sm:$0xf]
    %v278 = vld [vmem:[%s6] sm:$0x1]
    %v280 = vlaneseq
    %v281 = vshrl.u32 %v280, 7
    %v282 = vsub.s32 0, %v281
    %v283 = vrot.slane %v278, %v282
    %v289 = vunpack.c.l.b16 %v274
    %v290 = vunpack.c.l.b16 %v275
    %v291 = vunpack.c.l.b16 %v276
    %v292 = vunpack.c.l.b16 %v277
    %v293 = vpack.c.b16 %v290, %v289
    %v294 = vpack.c.b16 %v292, %v291
    %v298 = vsel %vm156, %v273, 0
    %300 = vmatprep.subr.bf16.mxu0 0
    %301 = vmatpush1.bf16.msra.mxu0 %v293
    %302 = vmatprep.subr.bf16.mxu0 0
    %303 = vmatpush1.bf16.msra.mxu0 %v294
    %304 = vmatprep.subr.bf16.mxu0 0
    %305 = vmatpush1.bf16.msra.mxu0 0
    %306 = vmatprep.subr.bf16.mxu0 0
    %307 = vmatpush1.bf16.msra.mxu0 0
    %308 = vmatprep.subr.bf16.mxu0 0
    %309 = vmatpush1.bf16.msra.mxu0 0
    %310 = vmatprep.subr.bf16.mxu0 0
    %311 = vmatpush1.bf16.msra.mxu0 0
    %312 = vmatprep.subr.bf16.mxu0 0
    %313 = vmatpush1.bf16.msra.mxu0 0
    %314 = vmatprep.subr.bf16.mxu0 0
    %315 = vmatpush1.bf16.msra.mxu0 0
    %316 = vmatprep.subr.bf16.mxu0 0
    %317 = vmatpush1.bf16.msra.mxu0 0
    %318 = vmatprep.subr.bf16.mxu0 0
    %319 = vmatpush1.bf16.msra.mxu0 0
    %320 = vmatprep.subr.bf16.mxu0 0
    %321 = vmatpush1.bf16.msra.mxu0 0
    %322 = vmatprep.subr.bf16.mxu0 0
    %323 = vmatpush1.bf16.msra.mxu0 0
    %324 = vmatprep.subr.bf16.mxu0 0
    %325 = vmatpush1.bf16.msra.mxu0 0
    %326 = vmatprep.subr.bf16.mxu0 0
    %327 = vmatpush1.bf16.msra.mxu0 0
    %328 = vmatprep.subr.bf16.mxu0 0
    %329 = vmatpush1.bf16.msra.mxu0 0
    %330 = vmatprep.subr.bf16.mxu0 0
    %331 = vmatpush1.bf16.msra.mxu0 0
    %332 = vmatprep.mubr.bf16.mxu0 0
    %333 = vmatmul.mubr.bf16.gmra.mrb[0].mxu0 %v298
    %v334 = vpop.f32.mrb[0].mxu0
    %v335 = vadd.f32 %v283, %v334
    %v336 = vpop.f32.mrb[0].mxu0
    %v337 = vpop.f32.mrb[0].mxu0
    %v338 = vadd.f32 %v283, %v337
    %v339 = vpop.f32.mrb[0].mxu0
    %340 = vdwg.mxu0
    %v341 = vmax.f32 %v335, 0.0
    %v342 = vmax.f32 %v338, 0.0
    %v343 = vpack.c.bf16 %v342, %v341
    %v344 = vld [vmem:[#allocation10] sm:$0xf]
    %v345 = vld [vmem:[#allocation10 + $0x4] sm:$0xf]
    %v346 = vld [vmem:[#allocation10 + $0x8] sm:$0xf]
    %v347 = vld [vmem:[#allocation10 + $0xc] sm:$0xf]
    %v348 = vld [vmem:[#allocation11] sm:$0x1]
    %v350 = vlaneseq
    %v351 = vshrl.u32 %v350, 7
    %v352 = vsub.s32 0, %v351
    %v353 = vrot.slane %v348, %v352
    %v359 = vunpack.c.l.b16 %v344
    %v360 = vunpack.c.l.b16 %v345
    %v361 = vunpack.c.l.b16 %v346
    %v362 = vunpack.c.l.b16 %v347
    %v363 = vpack.c.b16 %v360, %v359
    %v364 = vpack.c.b16 %v362, %v361
    %v368 = vsel %vm156, %v343, 0
    %370 = vmatprep.subr.bf16.mxu0 0
    %371 = vmatpush1.bf16.msra.mxu0 %v363
    %372 = vmatprep.subr.bf16.mxu0 0
    %373 = vmatpush1.bf16.msra.mxu0 %v364
    %374 = vmatprep.subr.bf16.mxu0 0
    %375 = vmatpush1.bf16.msra.mxu0 0
    %376 = vmatprep.subr.bf16.mxu0 0
    %377 = vmatpush1.bf16.msra.mxu0 0
    %378 = vmatprep.subr.bf16.mxu0 0
    %379 = vmatpush1.bf16.msra.mxu0 0
    %380 = vmatprep.subr.bf16.mxu0 0
    %381 = vmatpush1.bf16.msra.mxu0 0
    %382 = vmatprep.subr.bf16.mxu0 0
    %383 = vmatpush1.bf16.msra.mxu0 0
    %384 = vmatprep.subr.bf16.mxu0 0
    %385 = vmatpush1.bf16.msra.mxu0 0
    %386 = vmatprep.subr.bf16.mxu0 0
    %387 = vmatpush1.bf16.msra.mxu0 0
    %388 = vmatprep.subr.bf16.mxu0 0
    %389 = vmatpush1.bf16.msra.mxu0 0
    %390 = vmatprep.subr.bf16.mxu0 0
    %391 = vmatpush1.bf16.msra.mxu0 0
    %392 = vmatprep.subr.bf16.mxu0 0
    %393 = vmatpush1.bf16.msra.mxu0 0
    %394 = vmatprep.subr.bf16.mxu0 0
    %395 = vmatpush1.bf16.msra.mxu0 0
    %396 = vmatprep.subr.bf16.mxu0 0
    %397 = vmatpush1.bf16.msra.mxu0 0
    %398 = vmatprep.subr.bf16.mxu0 0
    %399 = vmatpush1.bf16.msra.mxu0 0
    %400 = vmatprep.subr.bf16.mxu0 0
    %401 = vmatpush1.bf16.msra.mxu0 0
    %402 = vmatprep.mubr.bf16.mxu0 0
    %403 = vmatmul.mubr.bf16.gmra.mrb[0].mxu0 %v368
    %v404 = vpop.f32.mrb[0].mxu0
    %v405 = vadd.f32 %v353, %v404
    %v406 = vpop.f32.mrb[0].mxu0
    %v407 = vpop.f32.mrb[0].mxu0
    %v408 = vadd.f32 %v353, %v407
    %v409 = vpop.f32.mrb[0].mxu0
    %410 = vdwg.mxu0
    %v411 = vmax.f32 %v405, 0.0
    %v412 = vmax.f32 %v408, 0.0
    %v413 = vpack.c.bf16 %v412, %v411
    %v414 = vld [vmem:[%s9] sm:$0xf]
    %v415 = vld [vmem:[%s9 + $0x4] sm:$0xf]
    %v416 = vld [vmem:[%s9 + $0x8] sm:$0xf]
    %v417 = vld [vmem:[%s9 + $0xc] sm:$0xf]
    %v418 = vld [vmem:[%s10] sm:$0x1]
    %v420 = vlaneseq
    %v421 = vshrl.u32 %v420, 7
    %v422 = vsub.s32 0, %v421
    %v423 = vrot.slane %v418, %v422
    %v429 = vunpack.c.l.b16 %v414
    %v430 = vunpack.c.l.b16 %v415
    %v431 = vunpack.c.l.b16 %v416
    %v432 = vunpack.c.l.b16 %v417
    %v433 = vpack.c.b16 %v430, %v429
    %v434 = vpack.c.b16 %v432, %v431
    %v438 = vsel %vm156, %v413, 0
    %440 = vmatprep.subr.bf16.mxu0 0
    %441 = vmatpush1.bf16.msra.mxu0 %v433
    %442 = vmatprep.subr.bf16.mxu0 0
    %443 = vmatpush1.bf16.msra.mxu0 %v434
    %444 = vmatprep.subr.bf16.mxu0 0
    %445 = vmatpush1.bf16.msra.mxu0 0
    %446 = vmatprep.subr.bf16.mxu0 0
    %447 = vmatpush1.bf16.msra.mxu0 0
    %448 = vmatprep.subr.bf16.mxu0 0
    %449 = vmatpush1.bf16.msra.mxu0 0
    %450 = vmatprep.subr.bf16.mxu0 0
    %451 = vmatpush1.bf16.msra.mxu0 0
    %452 = vmatprep.subr.bf16.mxu0 0
    %453 = vmatpush1.bf16.msra.mxu0 0
    %454 = vmatprep.subr.bf16.mxu0 0
    %455 = vmatpush1.bf16.msra.mxu0 0
    %456 = vmatprep.subr.bf16.mxu0 0
    %457 = vmatpush1.bf16.msra.mxu0 0
    %458 = vmatprep.subr.bf16.mxu0 0
    %459 = vmatpush1.bf16.msra.mxu0 0
    %460 = vmatprep.subr.bf16.mxu0 0
    %461 = vmatpush1.bf16.msra.mxu0 0
    %462 = vmatprep.subr.bf16.mxu0 0
    %463 = vmatpush1.bf16.msra.mxu0 0
    %464 = vmatprep.subr.bf16.mxu0 0
    %465 = vmatpush1.bf16.msra.mxu0 0
    %466 = vmatprep.subr.bf16.mxu0 0
    %467 = vmatpush1.bf16.msra.mxu0 0
    %468 = vmatprep.subr.bf16.mxu0 0
    %469 = vmatpush1.bf16.msra.mxu0 0
    %470 = vmatprep.subr.bf16.mxu0 0
    %471 = vmatpush1.bf16.msra.mxu0 0
    %472 = vmatprep.mubr.bf16.mxu0 0
    %473 = vmatmul.mubr.bf16.gmra.mrb[0].mxu0 %v438
    %v474 = vpop.f32.mrb[0].mxu0
    %v475 = vadd.f32 %v423, %v474
    %v476 = vpop.f32.mrb[0].mxu0
    %v477 = vpop.f32.mrb[0].mxu0
    %v478 = vadd.f32 %v423, %v477
    %v479 = vpop.f32.mrb[0].mxu0
    %480 = vdwg.mxu0
    %v481 = vmax.f32 %v475, 0.0
    %v482 = vmax.f32 %v478, 0.0
    %v483 = vld [vmem:[%s11] sm:$0x1]
    %v484 = vunpack.c.l.bf16 %v483
    %v485 = vlaneseq
    %v486 = vshrl.u32 %v485, 7
    %v487 = vsub.s32 0, %v486
    %v488 = vrot.slane %v484, %v487
    %v489 = vmul.f32 %v481, %v488
    %v490 = vmul.f32 %v482, %v488
    %v491 = vsel %vm156, %v489, 0.0
    %492 = vadd.xlane.f32.xlu0 %v491
    %v493 = vpop.xlane.xlu0 %492
    %v494 = vsel %vm156, %v490, 0.0
    %495 = vadd.xlane.f32.xlu0 %v494
    %v496 = vpop.xlane.xlu0 %495
    %v497 = vld [vmem:[#allocation2] sm:$0x1]
    %v499 = vlaneseq
    %v500 = vshrl.u32 %v499, 7
    %v501 = vsub.s32 0, %v500
    %v502 = vrot.slane %v497, %v501
    %v504 = vadd.f32 %v493, %v502
    %v505 = vadd.f32 %v496, %v502
    %vm506 = vcmask 7168
    %507 = vst.msk [vmem:[%s13] sm:$0xff] %vm506, %v504
    %508 = vst.msk [vmem:[%s13 + $0x8] sm:$0xff] %vm506, %v505
    // Predicated region
    $region78: #{tpu_custom_call.1} parent=1 // pred_check
      _
    $region79: #{tpu_custom_call.1} parent=1 // pred_check_branch
      %510 = sbr.rel (0) target = $region81
    $region80: #{tpu_custom_call.1} parent=1 // pred_region
      _
    $region81: #{tpu_custom_call.1} parent=1 // pred_fallthru
      _
    // Predicated region
    $region82: #{tpu_custom_call.1} parent=1 // pred_check
      _
    $region83: #{tpu_custom_call.1} parent=1 // pred_check_branch
      %512 = sbr.rel (0) target = $region85
    $region84: #{tpu_custom_call.1} parent=1 // pred_region
      _
    $region85: #{tpu_custom_call.1} parent=1 // pred_fallthru
      _
    %513 = vsyncpa [#allocation4], 1
    %514 = vsyncpa [#allocation6], 1
    %515 = vsyncpa [#allocation9], 1
    %516 = vsyncpa [#allocation12], 1

</llo_original>
